<compile_context>
chip_gen: v5e
topology: v5e:2x2
jax: 0.10.0
libtpu: 0.0.40
codegen_flags: <defaults>
</compile_context>

<pallas_src>
import functools

import jax
import jax.numpy as jnp
from jax import lax
from jax.experimental import pallas as pl
from jax.experimental.pallas import tpu as pltpu

LANE = 128       # TPU lane width
SUBLANE = 8      # f32 sublane height
OUT_SLAB = 128   # lane-dense output slab width (holds both 32-wide embeddings)
U_HID = 64       # user tower hidden width (real)
U_HID_PAD = 128  # user hidden padded to one full lane tile
I_HID = 128      # item tower hidden width (already lane aligned)
HID = U_HID_PAD + I_HID  # 256: stacked hidden width feeding the fused layer-2 weight


def _round_up(x, m):
    return (x + m - 1) // m * m


def _place(a, rows, cols, row_off=0, col_off=0):
    """Place 2-D array `a` into a zero f32 (rows, cols) array at (row_off, col_off)."""
    out = jnp.zeros((rows, cols), dtype=jnp.float32)
    return out.at[row_off:row_off + a.shape[0],
                  col_off:col_off + a.shape[1]].set(a.astype(jnp.float32))


# ----------------------------------------------------------------------------- kernels
def _two_tower_fused_kernel(x_ref, w1_ref, b1_ref, w2_ref, b2_ref, o_ref):
    """v6e/v7x path: block-diagonal layer 1 (one 256-wide MXU pass) + fused layer 2."""
    h = jnp.dot(x_ref[...], w1_ref[...],
                preferred_element_type=jnp.float32,
                precision=lax.Precision.HIGHEST) + b1_ref[...]
    h = jnp.maximum(h, 0.0)  # ReLU (f32 VPU path on all generations)
    out = jnp.dot(h, w2_ref[...],
                  preferred_element_type=jnp.float32,
                  precision=lax.Precision.HIGHEST) + b2_ref[...]
    o_ref[...] = out.astype(o_ref.dtype)


def _two_tower_split_kernel(xu_ref, xi_ref, uw1_ref, ub1_ref, iw1_ref, ib1_ref,
                            w2_ref, b2_ref, o_ref):
    """v5e path: two 128-wide layer-1 matmuls, single fused layer-2 matmul."""
    hu = jnp.dot(xu_ref[...], uw1_ref[...],
                 preferred_element_type=jnp.float32,
                 precision=lax.Precision.HIGHEST) + ub1_ref[...]
    hu = jnp.maximum(hu, 0.0)
    hi = jnp.dot(xi_ref[...], iw1_ref[...],
                 preferred_element_type=jnp.float32,
                 precision=lax.Precision.HIGHEST) + ib1_ref[...]
    hi = jnp.maximum(hi, 0.0)
    # Lane concat at a 128-aligned boundary: contiguous vreg placement, ~free.
    h = jnp.concatenate([hu, hi], axis=-1)                    # (tb, 256)
    out = jnp.dot(h, w2_ref[...],
                  preferred_element_type=jnp.float32,
                  precision=lax.Precision.HIGHEST) + b2_ref[...]
    o_ref[...] = out.astype(o_ref.dtype)


# ----------------------------------------------------------------------------- wrapper
def _pick_batch_tile(B, block_b):
    """Big tiles to amortize per-step overhead; >=2 grid steps for v7x's 2 TCs."""
    Bp8 = _round_up(B, SUBLANE)
    if Bp8 > block_b:
        tb = min(block_b, _round_up(pl.cdiv(Bp8, 2), SUBLANE))
    elif Bp8 >= 4 * SUBLANE:
        tb = _round_up(pl.cdiv(Bp8, 2), SUBLANE)
    else:
        tb = Bp8  # tiny batch: one step; splitting 8 rows across cores isn't worth it
    Bp = _round_up(Bp8, tb)
    return tb, Bp


def two_tower_pallas(user_features, item_features, params, embedding_dim,
                     *, fuse_layer1, block_b=512):
    """Run the fused two-tower kernel. Returns (user_emb, item_emb)."""
    B = user_features.shape[0]
    tb, Bp = _pick_batch_tile(B, block_b)

    def w_spec(w):  # weights/biases stay resident across the batch grid
        return pl.BlockSpec(w.shape, lambda i: (0, 0))

    def x_spec(width):  # full (unpadded) feature width == full array dim
        return pl.BlockSpec((tb, width), lambda i: (i, 0))

    out_spec = pl.BlockSpec((tb, OUT_SLAB), lambda i: (i, 0))
    out_shape = jax.ShapeDtypeStruct((Bp, OUT_SLAB), jnp.float32)
    cparams = pltpu.CompilerParams(dimension_semantics=("parallel",))

    if fuse_layer1:
        w1, b1, w2, b2 = params
        x = jnp.concatenate([user_features.astype(jnp.float32),
                             item_features.astype(jnp.float32)], axis=-1)  # (B, 150)
        if Bp != B:
            x = jnp.pad(x, ((0, Bp - B), (0, 0)))
        out = pl.pallas_call(
            _two_tower_fused_kernel,
            out_shape=out_shape,
            grid=(Bp // tb,),
            in_specs=[x_spec(x.shape[1]),
                      w_spec(w1), w_spec(b1), w_spec(w2), w_spec(b2)],
            out_specs=out_spec,
            compiler_params=cparams,
        )(x, w1, b1, w2, b2)
    else:
        uw1, ub1, iw1, ib1, w2, b2 = params
        xu = user_features.astype(jnp.float32)
        xi = item_features.astype(jnp.float32)
        if Bp != B:
            xu = jnp.pad(xu, ((0, Bp - B), (0, 0)))
            xi = jnp.pad(xi, ((0, Bp - B), (0, 0)))
        out = pl.pallas_call(
            _two_tower_split_kernel,
            out_shape=out_shape,
            grid=(Bp // tb,),
            in_specs=[x_spec(xu.shape[1]), x_spec(xi.shape[1]),
                      w_spec(uw1), w_spec(ub1), w_spec(iw1), w_spec(ib1),
                      w_spec(w2), w_spec(b2)],
            out_specs=out_spec,
            compiler_params=cparams,
        )(xu, xi, uw1, ub1, iw1, ib1, w2, b2)

    user_emb = out[:B, :embedding_dim]
    item_emb = out[:B, embedding_dim:2 * embedding_dim]
    return user_emb, item_emb


# ----------------------------------------------------------------------------- params
def init_linear(key, in_features, out_features):
    """PyTorch nn.Linear init (U(-k, k), k=1/sqrt(fan_in)); weight stored as (in, out)."""
    k = 1.0 / jnp.sqrt(jnp.float32(in_features))
    wkey, bkey = jax.random.split(key)
    w = jax.random.uniform(wkey, (in_features, out_features),
                           dtype=jnp.float32, minval=-k, maxval=k)
    b = jax.random.uniform(bkey, (1, out_features),
                           dtype=jnp.float32, minval=-k, maxval=k)
    return w, b


def make_two_tower_params(key, num_user_features, num_item_features, embedding_dim):
    k_u1, k_u2, k_i1, k_i2 = jax.random.split(key, 4)
    return {
        # user_tower: Linear(num_user_features, 64) -> ReLU -> Linear(64, emb)
        "user_w1_b1": init_linear(k_u1, num_user_features, 64),
        "user_w2_b2": init_linear(k_u2, 64, embedding_dim),
        # item_tower: Linear(num_item_features, 128) -> ReLU -> Linear(128, emb)
        "item_w1_b1": init_linear(k_i1, num_item_features, 128),
        "item_w2_b2": init_linear(k_i2, 128, embedding_dim),
    }


def pack_params_for_kernel(raw, embedding_dim, fuse_layer1):
    """One-time (init time) weight packing; nothing here runs per forward call."""
    uw1, ub1 = raw["user_w1_b1"]   # (50, 64),  (1, 64)
    uw2, ub2 = raw["user_w2_b2"]   # (64, 32),  (1, 32)
    iw1, ib1 = raw["item_w1_b1"]   # (100,128), (1, 128)
    iw2, ib2 = raw["item_w2_b2"]   # (128, 32), (1, 32)
    assert 2 * embedding_dim <= OUT_SLAB

    # Fused layer 2: stack uw2/iw2 vertically into one (256, 128) weight; put the
    # two biases into disjoint columns of one (1, 128) bias.
    w2 = jnp.zeros((HID, OUT_SLAB), jnp.float32)
    w2 = w2.at[:uw2.shape[0], :embedding_dim].set(uw2)
    w2 = w2.at[U_HID_PAD:U_HID_PAD + iw2.shape[0],
               embedding_dim:2 * embedding_dim].set(iw2)
    b2 = jnp.zeros((1, OUT_SLAB), jnp.float32)
    b2 = b2.at[:, :embedding_dim].set(ub2)
    b2 = b2.at[:, embedding_dim:2 * embedding_dim].set(ib2)

    if fuse_layer1:
        # Block-diagonal layer 1 over the concatenated (user || item) features.
        n_uf, n_if = uw1.shape[0], iw1.shape[0]
        w1 = jnp.zeros((n_uf + n_if, HID), jnp.float32)        # (150, 256)
        w1 = w1.at[:n_uf, :uw1.shape[1]].set(uw1)
        w1 = w1.at[n_uf:, U_HID_PAD:U_HID_PAD + iw1.shape[1]].set(iw1)
        b1 = jnp.zeros((1, HID), jnp.float32)
        b1 = b1.at[:, :ub1.shape[1]].set(ub1)
        b1 = b1.at[:, U_HID_PAD:U_HID_PAD + ib1.shape[1]].set(ib1)
        return (w1, b1, w2, b2)

    # Split layer 1 (v5e): feature (K) dims stay unpadded; hidden (N) dims padded
    # to a full lane tile so the in-kernel hu||hi concat is lane-aligned.
    uw1k = _place(uw1, uw1.shape[0], U_HID_PAD)
    ub1k = _place(ub1, 1, U_HID_PAD)
    iw1k = _place(iw1, iw1.shape[0], I_HID)
    ib1k = _place(ib1, 1, I_HID)
    return (uw1k, ub1k, iw1k, ib1k, w2, b2)


def default_fuse_layer1():
    """Fuse layer 1 only where the MXU is 256x256 (v6e / v7x); keep towers split on
    v5e / v4 whose 128x128 MXU tiles would otherwise multiply zeros."""
    try:
        kind = jax.devices()[0].device_kind.lower()
    except Exception:
        return False
    return ("v6" in kind) or ("v7" in kind)


@functools.partial(jax.jit, static_argnames=("embedding_dim", "fuse_layer1"))
def two_tower_forward(params, user_features, item_features, embedding_dim, fuse_layer1):
    return two_tower_pallas(user_features, item_features, params, embedding_dim,
                            fuse_layer1=fuse_layer1)


def two_tower_reference(raw, user_features, item_features):
    """Pure-JAX reference matching the PyTorch forward (strict f32 matmuls)."""
    uw1, ub1 = raw["user_w1_b1"]
    uw2, ub2 = raw["user_w2_b2"]
    iw1, ib1 = raw["item_w1_b1"]
    iw2, ib2 = raw["item_w2_b2"]
    hp = lax.Precision.HIGHEST
    u = jnp.maximum(jnp.dot(user_features, uw1, precision=hp) + ub1, 0.0)
    u = jnp.dot(u, uw2, precision=hp) + ub2
    i = jnp.maximum(jnp.dot(item_features, iw1, precision=hp) + ib1, 0.0)
    i = jnp.dot(i, iw2, precision=hp) + ib2
    return u, i


if __name__ == "__main__":
    embedding_dim = 32
    num_user_features = 50
    num_item_features = 100
    batch = 8

    root = jax.random.PRNGKey(0)
    k_params, k_user, k_item = jax.random.split(root, 3)

    raw_params = make_two_tower_params(
        k_params, num_user_features, num_item_features, embedding_dim)
    fuse_layer1 = default_fuse_layer1()
    params = pack_params_for_kernel(raw_params, embedding_dim, fuse_layer1)

    user_features = jax.random.uniform(
        k_user, (batch, num_user_features), dtype=jnp.float32)
    item_features = jax.random.uniform(
        k_item, (batch, num_item_features), dtype=jnp.float32)

    user_emb, item_emb = two_tower_forward(
        params, user_features, item_features, embedding_dim, fuse_layer1)
    user_emb, item_emb = jax.block_until_ready((user_emb, item_emb))

    # Sanity-check against the pure-JAX reference.
    ref_u, ref_i = two_tower_reference(raw_params, user_features, item_features)
    assert user_emb.shape == (batch, embedding_dim)
    assert item_emb.shape == (batch, embedding_dim)
    assert jnp.allclose(user_emb, ref_u, atol=1e-5, rtol=1e-5)
    assert jnp.allclose(item_emb, ref_i, atol=1e-5, rtol=1e-5)

    print("KERNEL_OK")
</pallas_src>

<mosaic_0001>
module attributes {stable_mosaic.version = 11 : i64} {
  func.func @_two_tower_split_kernel(%arg0: i32, %arg1: memref<8x50xf32, #tpu.memory_space<vmem>>, %arg2: memref<8x100xf32, #tpu.memory_space<vmem>>, %arg3: memref<50x128xf32, #tpu.memory_space<vmem>>, %arg4: memref<1x128xf32, #tpu.memory_space<vmem>>, %arg5: memref<100x128xf32, #tpu.memory_space<vmem>>, %arg6: memref<1x128xf32, #tpu.memory_space<vmem>>, %arg7: memref<256x128xf32, #tpu.memory_space<vmem>>, %arg8: memref<1x128xf32, #tpu.memory_space<vmem>>, %arg9: memref<8x128xf32, #tpu.memory_space<vmem>>) attributes {dimension_semantics = [#tpu.dimension_semantics<parallel>], iteration_bounds = array<i64: 1>, scalar_prefetch = 0 : i64, scratch_operands = 0 : i64, tpu.core_type = #tpu.core_type<tc>, window_params = [{transform_indices = @transform_0, window_bounds = array<i64: 8, 50>}, {transform_indices = @transform_1, window_bounds = array<i64: 8, 100>}, {pipeline_mode = #tpu.pipeline_mode<synchronous>, transform_indices = @transform_2, window_bounds = array<i64: 50, 128>}, {pipeline_mode = #tpu.pipeline_mode<synchronous>, transform_indices = @transform_3, window_bounds = array<i64: 1, 128>}, {pipeline_mode = #tpu.pipeline_mode<synchronous>, transform_indices = @transform_4, window_bounds = array<i64: 100, 128>}, {pipeline_mode = #tpu.pipeline_mode<synchronous>, transform_indices = @transform_5, window_bounds = array<i64: 1, 128>}, {pipeline_mode = #tpu.pipeline_mode<synchronous>, transform_indices = @transform_6, window_bounds = array<i64: 256, 128>}, {pipeline_mode = #tpu.pipeline_mode<synchronous>, transform_indices = @transform_7, window_bounds = array<i64: 1, 128>}, {transform_indices = @transform_8, window_bounds = array<i64: 8, 128>}]} {
    %c0 = arith.constant 0 : index
    %c0_0 = arith.constant 0 : index
    %0 = vector.load %arg1[%c0, %c0_0] : memref<8x50xf32, #tpu.memory_space<vmem>>, vector<8x50xf32>
    %c0_1 = arith.constant 0 : index
    %c0_2 = arith.constant 0 : index
    %1 = vector.load %arg3[%c0_1, %c0_2] : memref<50x128xf32, #tpu.memory_space<vmem>>, vector<50x128xf32>
    %cst = arith.constant dense<0.000000e+00> : vector<8x128xf32>
    %2 = tpu.matmul %0, %1, %cst {dimension_numbers = #tpu.dot_dimension_numbers<[1], [0], [0], [1], [0, 0, 1, 1], [], []>, precision = #tpu.contract_precision<fp32>} : vector<8x50xf32>, vector<50x128xf32>, vector<8x128xf32> -> vector<8x128xf32>
    %c0_3 = arith.constant 0 : index
    %c0_4 = arith.constant 0 : index
    %3 = vector.load %arg4[%c0_3, %c0_4] : memref<1x128xf32, #tpu.memory_space<vmem>>, vector<1x128xf32>
    %4 = vector.broadcast %3 : vector<1x128xf32> to vector<8x128xf32>
    %5 = arith.addf %2, %4 : vector<8x128xf32>
    %cst_5 = arith.constant 0.000000e+00 : f32
    %6 = vector.broadcast %cst_5 : f32 to vector<8x128xf32>
    %7 = arith.maximumf %5, %6 : vector<8x128xf32>
    %c0_6 = arith.constant 0 : index
    %c0_7 = arith.constant 0 : index
    %8 = vector.load %arg2[%c0_6, %c0_7] : memref<8x100xf32, #tpu.memory_space<vmem>>, vector<8x100xf32>
    %c0_8 = arith.constant 0 : index
    %c0_9 = arith.constant 0 : index
    %9 = vector.load %arg5[%c0_8, %c0_9] : memref<100x128xf32, #tpu.memory_space<vmem>>, vector<100x128xf32>
    %cst_10 = arith.constant dense<0.000000e+00> : vector<8x128xf32>
    %10 = tpu.matmul %8, %9, %cst_10 {dimension_numbers = #tpu.dot_dimension_numbers<[1], [0], [0], [1], [0, 0, 1, 1], [], []>, precision = #tpu.contract_precision<fp32>} : vector<8x100xf32>, vector<100x128xf32>, vector<8x128xf32> -> vector<8x128xf32>
    %c0_11 = arith.constant 0 : index
    %c0_12 = arith.constant 0 : index
    %11 = vector.load %arg6[%c0_11, %c0_12] : memref<1x128xf32, #tpu.memory_space<vmem>>, vector<1x128xf32>
    %12 = vector.broadcast %11 : vector<1x128xf32> to vector<8x128xf32>
    %13 = arith.addf %10, %12 : vector<8x128xf32>
    %cst_13 = arith.constant 0.000000e+00 : f32
    %14 = vector.broadcast %cst_13 : f32 to vector<8x128xf32>
    %15 = arith.maximumf %13, %14 : vector<8x128xf32>
    %16 = tpu.concatenate %7, %15 in 1 : vector<8x128xf32>, vector<8x128xf32> -> vector<8x256xf32>
    %c0_14 = arith.constant 0 : index
    %c0_15 = arith.constant 0 : index
    %17 = vector.load %arg7[%c0_14, %c0_15] : memref<256x128xf32, #tpu.memory_space<vmem>>, vector<256x128xf32>
    %cst_16 = arith.constant dense<0.000000e+00> : vector<8x128xf32>
    %18 = tpu.matmul %16, %17, %cst_16 {dimension_numbers = #tpu.dot_dimension_numbers<[1], [0], [0], [1], [0, 0, 1, 1], [], []>, precision = #tpu.contract_precision<fp32>} : vector<8x256xf32>, vector<256x128xf32>, vector<8x128xf32> -> vector<8x128xf32>
    %c0_17 = arith.constant 0 : index
    %c0_18 = arith.constant 0 : index
    %19 = vector.load %arg8[%c0_17, %c0_18] : memref<1x128xf32, #tpu.memory_space<vmem>>, vector<1x128xf32>
    %20 = vector.broadcast %19 : vector<1x128xf32> to vector<8x128xf32>
    %21 = arith.addf %18, %20 : vector<8x128xf32>
    %c0_19 = arith.constant 0 : index
    %c0_20 = arith.constant 0 : index
    %22 = vector.load %arg9[%c0_19, %c0_20] : memref<8x128xf32, #tpu.memory_space<vmem>>, vector<8x128xf32>
    tpu.vector_store %arg9[%c0_19, %c0_20], %21 {strides = array<i32>} : memref<8x128xf32, #tpu.memory_space<vmem>>, vector<8x128xf32>,
    return
  }
  func.func @transform_0(%arg0: i32) -> (i32, i32) {
    %c0_i32 = arith.constant 0 : i32
    %c0_i32_0 = arith.constant 0 : i32
    return %arg0, %c0_i32 : i32, i32
  }
  func.func @transform_1(%arg0: i32) -> (i32, i32) {
    %c0_i32 = arith.constant 0 : i32
    %c0_i32_0 = arith.constant 0 : i32
    return %arg0, %c0_i32 : i32, i32
  }
  func.func @transform_2(%arg0: i32) -> (i32, i32) {
    %c0_i32 = arith.constant 0 : i32
    %c0_i32_0 = arith.constant 0 : i32
    %c0_i32_1 = arith.constant 0 : i32
    return %c0_i32, %c0_i32_0 : i32, i32
  }
  func.func @transform_3(%arg0: i32) -> (i32, i32) {
    %c0_i32 = arith.constant 0 : i32
    %c0_i32_0 = arith.constant 0 : i32
    %c0_i32_1 = arith.constant 0 : i32
    return %c0_i32, %c0_i32_0 : i32, i32
  }
  func.func @transform_4(%arg0: i32) -> (i32, i32) {
    %c0_i32 = arith.constant 0 : i32
    %c0_i32_0 = arith.constant 0 : i32
    %c0_i32_1 = arith.constant 0 : i32
    return %c0_i32, %c0_i32_0 : i32, i32
  }
  func.func @transform_5(%arg0: i32) -> (i32, i32) {
    %c0_i32 = arith.constant 0 : i32
    %c0_i32_0 = arith.constant 0 : i32
    %c0_i32_1 = arith.constant 0 : i32
    return %c0_i32, %c0_i32_0 : i32, i32
  }
  func.func @transform_6(%arg0: i32) -> (i32, i32) {
    %c0_i32 = arith.constant 0 : i32
    %c0_i32_0 = arith.constant 0 : i32
    %c0_i32_1 = arith.constant 0 : i32
    return %c0_i32, %c0_i32_0 : i32, i32
  }
  func.func @transform_7(%arg0: i32) -> (i32, i32) {
    %c0_i32 = arith.constant 0 : i32
    %c0_i32_0 = arith.constant 0 : i32
    %c0_i32_1 = arith.constant 0 : i32
    return %c0_i32, %c0_i32_0 : i32, i32
  }
  func.func @transform_8(%arg0: i32) -> (i32, i32) {
    %c0_i32 = arith.constant 0 : i32
    %c0_i32_0 = arith.constant 0 : i32
    return %arg0, %c0_i32 : i32, i32
  }
}

</mosaic_0001>

<llo_original>
// kernel: two_tower_forward.1
$region0: #{two_tower_forward.1}
  #allocation0 [shape = 'u32[]', space=smem, size = 0x4, offset = 0x4, fixed_abs, tag = 'smem constant byte address 0x4 - core index']
  #allocation1 [shape = 'u32[72,128]{1,0:T(1,128)}', space=vmem, size = 0x9000, scoped, tag = 'internal scratch']
  %s0 = inlined_call_operand.hbm [shape: f32[8,50], index: 0, kind: input, shape index: {}]
  %s1 = inlined_call_operand.hbm [shape: f32[8,100], index: 1, kind: input, shape index: {}]
  %s2 = inlined_call_operand.hbm [shape: f32[50,128], index: 2, kind: input, shape index: {}]
  %s3 = inlined_call_operand.hbm [shape: f32[1,128], index: 3, kind: input, shape index: {}]
  %s4 = inlined_call_operand.hbm [shape: f32[100,128], index: 4, kind: input, shape index: {}]
  %s5 = inlined_call_operand.vmem [shape: f32[1,128], index: 5, kind: input, shape index: {}]
  %s6 = inlined_call_operand.hbm [shape: f32[256,128], index: 6, kind: input, shape index: {}]
  %s7 = inlined_call_operand.vmem [shape: f32[1,128], index: 7, kind: input, shape index: {}]
  %s8 = inlined_call_operand.vmem [shape: f32[8,128], index: 8, kind: output, shape index: {}]
  %s9 = sld [smem:[#allocation0]]
  $region66: #{two_tower_forward.1} parent=0
    _
  %s11 = ssub.s32 1, %s9
  %s12 = scalar_select 0, %s11, %s9
  $region1: #{two_tower_forward.1} parent=0
    #allocation2 [shape = 'u8[4096]{0}', space=vmem, size = 0x1000, scoped, tag = 'input window, operand 0, single buffered']
    #allocation3 [shape = 's32[1]{0}', space=sflag, size = 0x4, scoped, tag = 'scoped memory for two_tower_forward.1']
    #allocation4 [shape = 'u8[4096]{0}', space=vmem, size = 0x1000, scoped, tag = 'input window, operand 1, single buffered']
    #allocation5 [shape = 's32[1]{0}', space=sflag, size = 0x4, scoped, tag = 'scoped memory for two_tower_forward.1']
    #allocation6 [shape = 'u8[28672]{0}', space=vmem, size = 0x7000, scoped, tag = 'input window, operand 2, single buffered']
    #allocation7 [shape = 'u8[512]{0}', space=vmem, size = 0x400, scoped, tag = 'input window, operand 3, single buffered']
    #allocation8 [shape = 's32[1]{0}', space=sflag, size = 0x4, scoped, tag = 'scoped memory for two_tower_forward.1']
    #allocation9 [shape = 'u8[53248]{0}', space=vmem, size = 0xd000, scoped, tag = 'input window, operand 4, single buffered']
    #allocation10 [shape = 'u8[131072]{0}', space=vmem, size = 0x20000, scoped, tag = 'input window, operand 6, single buffered']
    #allocation11 [shape = 's32[1]{0}', space=sflag, size = 0x4, scoped, tag = 'scoped memory for two_tower_forward.1']
    %13 = vsyncpa [#allocation3], 0
    %14 = vsyncpa [#allocation5], 0
    %15 = vsyncpa [#allocation8], 0
    %16 = vsyncpa [#allocation11], 0
    // Predicated region
    $region2: #{two_tower_forward.1} parent=1 // pred_check
      _
    $region3: #{two_tower_forward.1} parent=1 // pred_check_branch
      %18 = sbr.rel (0) target = $region5
    $region4: #{two_tower_forward.1} parent=1 // pred_region
      %20 = vsyncadd [#allocation3], 0
      %s22 = sshll.u32 %s0, 4
      %s23 = int_to_ptr.hbm [resolvable:$true] %s22
      %s24 = sshll.u32 [#allocation2], 4
      %s25 = int_to_ptr.vmem [resolvable:$true] %s24
      %27 = dma.hbm_to_vmem [thread:$0]  %s23, 128, %s25, [#allocation3]
    $region5: #{two_tower_forward.1} parent=1 // pred_fallthru
      _
    // Predicated region
    $region6: #{two_tower_forward.1} parent=1 // pred_check
      _
    $region7: #{two_tower_forward.1} parent=1 // pred_check_branch
      %29 = sbr.rel (0) target = $region9
    $region8: #{two_tower_forward.1} parent=1 // pred_region
      %31 = vsyncadd [#allocation5], 0
      %s33 = sshll.u32 %s1, 4
      %s34 = int_to_ptr.hbm [resolvable:$true] %s33
      %s35 = sshll.u32 [#allocation4], 4
      %s36 = int_to_ptr.vmem [resolvable:$true] %s35
      %38 = dma.hbm_to_vmem [thread:$0]  %s34, 128, %s36, [#allocation5]
    $region9: #{two_tower_forward.1} parent=1 // pred_fallthru
      _
    // Predicated region
    $region10: #{two_tower_forward.1} parent=1 // pred_check
      _
    $region11: #{two_tower_forward.1} parent=1 // pred_check_branch
      %40 = sbr.rel (0) target = $region13
    $region12: #{two_tower_forward.1} parent=1 // pred_region
      %42 = vsyncadd [#allocation5], 0
      %s43 = sshll.u32 %s2, 4
      %s44 = int_to_ptr.hbm [resolvable:$true] %s43
      %s45 = sshll.u32 [#allocation6], 4
      %s46 = int_to_ptr.vmem [resolvable:$true] %s45
      %51 = dma.hbm_to_vmem [thread:$0]  %s44, 896, %s46, [#allocation5], 128, 128, 8
    $region13: #{two_tower_forward.1} parent=1 // pred_fallthru
      _
    // Predicated region
    $region14: #{two_tower_forward.1} parent=1 // pred_check
      _
    $region15: #{two_tower_forward.1} parent=1 // pred_check_branch
      %53 = sbr.rel (0) target = $region17
    $region16: #{two_tower_forward.1} parent=1 // pred_region
      %55 = vsyncadd [#allocation8], 0
      %s57 = sshll.u32 %s3, 4
      %s58 = int_to_ptr.hbm [resolvable:$true] %s57
      %s59 = sshll.u32 [#allocation7], 4
      %s60 = int_to_ptr.vmem [resolvable:$true] %s59
      %62 = dma.hbm_to_vmem [thread:$0]  %s58, 16, %s60, [#allocation8]
    $region17: #{two_tower_forward.1} parent=1 // pred_fallthru
      _
    // Predicated region
    $region18: #{two_tower_forward.1} parent=1 // pred_check
      _
    $region19: #{two_tower_forward.1} parent=1 // pred_check_branch
      %64 = sbr.rel (0) target = $region21
    $region20: #{two_tower_forward.1} parent=1 // pred_region
      %66 = vsyncadd [#allocation8], 0
      %s67 = sshll.u32 %s4, 4
      %s68 = int_to_ptr.hbm [resolvable:$true] %s67
      %s69 = sshll.u32 [#allocation9], 4
      %s70 = int_to_ptr.vmem [resolvable:$true] %s69
      %75 = dma.hbm_to_vmem [thread:$0]  %s68, 1664, %s70, [#allocation8], 128, 128, 8
    $region21: #{two_tower_forward.1} parent=1 // pred_fallthru
      _
    // Predicated region
    $region22: #{two_tower_forward.1} parent=1 // pred_check
      _
    $region23: #{two_tower_forward.1} parent=1 // pred_check_branch
      %77 = sbr.rel (0) target = $region25
    $region24: #{two_tower_forward.1} parent=1 // pred_region
      _
    $region25: #{two_tower_forward.1} parent=1 // pred_fallthru
      _
    // Predicated region
    $region26: #{two_tower_forward.1} parent=1 // pred_check
      _
    $region27: #{two_tower_forward.1} parent=1 // pred_check_branch
      %79 = sbr.rel (0) target = $region29
    $region28: #{two_tower_forward.1} parent=1 // pred_region
      %81 = vsyncadd [#allocation11], 0
      %s82 = sshll.u32 %s6, 4
      %s83 = int_to_ptr.hbm [resolvable:$true] %s82
      %s84 = sshll.u32 [#allocation10], 4
      %s85 = int_to_ptr.vmem [resolvable:$true] %s84
      %90 = dma.hbm_to_vmem [thread:$0]  %s83, 4096, %s85, [#allocation11], 128, 128, 8
    $region29: #{two_tower_forward.1} parent=1 // pred_fallthru
      _
    // Predicated region
    $region30: #{two_tower_forward.1} parent=1 // pred_check
      _
    $region31: #{two_tower_forward.1} parent=1 // pred_check_branch
      %92 = sbr.rel (0) target = $region33
    $region32: #{two_tower_forward.1} parent=1 // pred_region
      _
    $region33: #{two_tower_forward.1} parent=1 // pred_fallthru
      _
    // Predicated region
    $region34: #{two_tower_forward.1} parent=1 // pred_check
      _
    $region35: #{two_tower_forward.1} parent=1 // pred_check_branch
      %94 = sbr.rel (0) target = $region37
    $region36: #{two_tower_forward.1} parent=1 // pred_region
      %96 = dma.done [#allocation3], 128
    $region37: #{two_tower_forward.1} parent=1 // pred_fallthru
      _
    // Predicated region
    $region38: #{two_tower_forward.1} parent=1 // pred_check
      _
    $region39: #{two_tower_forward.1} parent=1 // pred_check_branch
      %98 = sbr.rel (0) target = $region41
    $region40: #{two_tower_forward.1} parent=1 // pred_region
      %100 = dma.done [#allocation5], 128
    $region41: #{two_tower_forward.1} parent=1 // pred_fallthru
      _
    // Predicated region
    $region42: #{two_tower_forward.1} parent=1 // pred_check
      _
    $region43: #{two_tower_forward.1} parent=1 // pred_check_branch
      %102 = sbr.rel (0) target = $region45
    $region44: #{two_tower_forward.1} parent=1 // pred_region
      %104 = dma.done [#allocation5], 896
    $region45: #{two_tower_forward.1} parent=1 // pred_fallthru
      _
    // Predicated region
    $region46: #{two_tower_forward.1} parent=1 // pred_check
      _
    $region47: #{two_tower_forward.1} parent=1 // pred_check_branch
      %106 = sbr.rel (0) target = $region49
    $region48: #{two_tower_forward.1} parent=1 // pred_region
      %108 = dma.done [#allocation8], 16
    $region49: #{two_tower_forward.1} parent=1 // pred_fallthru
      _
    // Predicated region
    $region50: #{two_tower_forward.1} parent=1 // pred_check
      _
    $region51: #{two_tower_forward.1} parent=1 // pred_check_branch
      %110 = sbr.rel (0) target = $region53
    $region52: #{two_tower_forward.1} parent=1 // pred_region
      %112 = dma.done [#allocation8], 1664
    $region53: #{two_tower_forward.1} parent=1 // pred_fallthru
      _
    // Predicated region
    $region54: #{two_tower_forward.1} parent=1 // pred_check
      _
    $region55: #{two_tower_forward.1} parent=1 // pred_check_branch
      %114 = sbr.rel (0) target = $region57
    $region56: #{two_tower_forward.1} parent=1 // pred_region
      %116 = dma.done [#allocation11], 4096
    $region57: #{two_tower_forward.1} parent=1 // pred_fallthru
      _
    %v117 = vld [vmem:[#allocation2] sm:$0xff]
    %v118 = vld [vmem:[#allocation6] sm:$0xff]
    %v119 = vld [vmem:[#allocation6 + $0x8] sm:$0xff]
    %v120 = vld [vmem:[#allocation6 + $0x10] sm:$0xff]
    %v121 = vld [vmem:[#allocation6 + $0x18] sm:$0xff]
    %v122 = vld [vmem:[#allocation6 + $0x20] sm:$0xff]
    %v123 = vld [vmem:[#allocation6 + $0x28] sm:$0xff]
    %v124 = vld [vmem:[#allocation6 + $0x30] sm:$0x3]
    %v125 = vld [vmem:[#allocation7] sm:$0x1]
    %v127 = vperm.slane %v125, 0
    %vm129 = vcmask 408576
    %v131 = vsel %vm129, %v117, 0
    %vm133 = vcmask 1041408
    %v135 = vsel %vm133, %v124, 0
    %137 = vmatpush.msra.mxu0 0.0
    %138 = vmatpush.msra.mxu0 0.0
    %139 = vmatpush.msra.mxu0 0.0
    %140 = vmatpush.msra.mxu0 0.0
    %141 = vmatpush.msra.mxu0 0.0
    %142 = vmatpush.msra.mxu0 0.0
    %143 = vmatpush.msra.mxu0 0.0
    %144 = vmatpush.msra.mxu0 0.0
    %145 = vmatpush.msra.mxu0 0.0
    %v146 = vand.u32 %v135, 4294901760
    %147 = vmatpush.msra.mxu0 %v146
    %v148 = vand.u32 %v123, 4294901760
    %149 = vmatpush.msra.mxu0 %v148
    %v150 = vand.u32 %v122, 4294901760
    %151 = vmatpush.msra.mxu0 %v150
    %v152 = vand.u32 %v121, 4294901760
    %153 = vmatpush.msra.mxu0 %v152
    %v154 = vand.u32 %v120, 4294901760
    %155 = vmatpush.msra.mxu0 %v154
    %v156 = vand.u32 %v119, 4294901760
    %157 = vmatpush.msra.mxu0 %v156
    %v158 = vand.u32 %v118, 4294901760
    %159 = vmatpush.msra.mxu0 %v158
    %v160 = vand.u32 %v131, 4294901760
    %v161 = vsub.f32 %v131, %v160
    %v162 = vand.u32 %v161, 4294901760
    %v163 = vsub.f32 %v161, %v162
    %v164 = vand.u32 %v163, 4294901760
    %165 = vmatmul.f32.gmra.mxu0 %v164
    %v166 = vpop.f32.mrf.mxu0
    %v167 = vadd.f32 %v127, %v166
    %168 = vdwg.mxu0
    %169 = vmatpush.msra.mxu0 0.0
    %170 = vmatpush.msra.mxu0 0.0
    %171 = vmatpush.msra.mxu0 0.0
    %172 = vmatpush.msra.mxu0 0.0
    %173 = vmatpush.msra.mxu0 0.0
    %174 = vmatpush.msra.mxu0 0.0
    %175 = vmatpush.msra.mxu0 0.0
    %176 = vmatpush.msra.mxu0 0.0
    %177 = vmatpush.msra.mxu0 0.0
    %v178 = vand.u32 %v135, 4294901760
    %v179 = vsub.f32 %v135, %v178
    %v180 = vand.u32 %v179, 4294901760
    %v181 = vsub.f32 %v179, %v180
    %v182 = vand.u32 %v181, 4294901760
    %183 = vmatpush.msra.mxu0 %v182
    %v184 = vand.u32 %v123, 4294901760
    %v185 = vsub.f32 %v123, %v184
    %v186 = vand.u32 %v185, 4294901760
    %v187 = vsub.f32 %v185, %v186
    %v188 = vand.u32 %v187, 4294901760
    %189 = vmatpush.msra.mxu0 %v188
    %v190 = vand.u32 %v122, 4294901760
    %v191 = vsub.f32 %v122, %v190
    %v192 = vand.u32 %v191, 4294901760
    %v193 = vsub.f32 %v191, %v192
    %v194 = vand.u32 %v193, 4294901760
    %195 = vmatpush.msra.mxu0 %v194
    %v196 = vand.u32 %v121, 4294901760
    %v197 = vsub.f32 %v121, %v196
    %v198 = vand.u32 %v197, 4294901760
    %v199 = vsub.f32 %v197, %v198
    %v200 = vand.u32 %v199, 4294901760
    %201 = vmatpush.msra.mxu0 %v200
    %v202 = vand.u32 %v120, 4294901760
    %v203 = vsub.f32 %v120, %v202
    %v204 = vand.u32 %v203, 4294901760
    %v205 = vsub.f32 %v203, %v204
    %v206 = vand.u32 %v205, 4294901760
    %207 = vmatpush.msra.mxu0 %v206
    %v208 = vand.u32 %v119, 4294901760
    %v209 = vsub.f32 %v119, %v208
    %v210 = vand.u32 %v209, 4294901760
    %v211 = vsub.f32 %v209, %v210
    %v212 = vand.u32 %v211, 4294901760
    %213 = vmatpush.msra.mxu0 %v212
    %v214 = vand.u32 %v118, 4294901760
    %v215 = vsub.f32 %v118, %v214
    %v216 = vand.u32 %v215, 4294901760
    %v217 = vsub.f32 %v215, %v216
    %v218 = vand.u32 %v217, 4294901760
    %219 = vmatpush.msra.mxu0 %v218
    %v220 = vand.u32 %v131, 4294901760
    %221 = vmatmul.f32.gmra.mxu0 %v220
    %v222 = vpop.f32.mrf.mxu0
    %v223 = vadd.f32 %v167, %v222
    %224 = vdwg.mxu0
    %225 = vmatpush.msra.mxu0 0.0
    %226 = vmatpush.msra.mxu0 0.0
    %227 = vmatpush.msra.mxu0 0.0
    %228 = vmatpush.msra.mxu0 0.0
    %229 = vmatpush.msra.mxu0 0.0
    %230 = vmatpush.msra.mxu0 0.0
    %231 = vmatpush.msra.mxu0 0.0
    %232 = vmatpush.msra.mxu0 0.0
    %233 = vmatpush.msra.mxu0 0.0
    %v234 = vand.u32 %v135, 4294901760
    %v235 = vsub.f32 %v135, %v234
    %236 = vmatpush.msra.mxu0 %v235
    %v237 = vand.u32 %v123, 4294901760
    %v238 = vsub.f32 %v123, %v237
    %239 = vmatpush.msra.mxu0 %v238
    %v240 = vand.u32 %v122, 4294901760
    %v241 = vsub.f32 %v122, %v240
    %242 = vmatpush.msra.mxu0 %v241
    %v243 = vand.u32 %v121, 4294901760
    %v244 = vsub.f32 %v121, %v243
    %245 = vmatpush.msra.mxu0 %v244
    %v246 = vand.u32 %v120, 4294901760
    %v247 = vsub.f32 %v120, %v246
    %248 = vmatpush.msra.mxu0 %v247
    %v249 = vand.u32 %v119, 4294901760
    %v250 = vsub.f32 %v119, %v249
    %251 = vmatpush.msra.mxu0 %v250
    %v252 = vand.u32 %v118, 4294901760
    %v253 = vsub.f32 %v118, %v252
    %254 = vmatpush.msra.mxu0 %v253
    %v255 = vand.u32 %v131, 4294901760
    %v256 = vsub.f32 %v131, %v255
    %257 = vmatmul.f32.gmra.mxu0 %v256
    %v258 = vpop.f32.mrf.mxu0
    %v259 = vadd.f32 %v223, %v258
    %260 = vdwg.mxu0
    %261 = vmatpush.msra.mxu0 0.0
    %262 = vmatpush.msra.mxu0 0.0
    %263 = vmatpush.msra.mxu0 0.0
    %264 = vmatpush.msra.mxu0 0.0
    %265 = vmatpush.msra.mxu0 0.0
    %266 = vmatpush.msra.mxu0 0.0
    %267 = vmatpush.msra.mxu0 0.0
    %268 = vmatpush.msra.mxu0 0.0
    %269 = vmatpush.msra.mxu0 0.0
    %v270 = vand.u32 %v135, 4294901760
    %271 = vmatpush.msra.mxu0 %v270
    %v272 = vand.u32 %v123, 4294901760
    %273 = vmatpush.msra.mxu0 %v272
    %v274 = vand.u32 %v122, 4294901760
    %275 = vmatpush.msra.mxu0 %v274
    %v276 = vand.u32 %v121, 4294901760
    %277 = vmatpush.msra.mxu0 %v276
    %v278 = vand.u32 %v120, 4294901760
    %279 = vmatpush.msra.mxu0 %v278
    %v280 = vand.u32 %v119, 4294901760
    %281 = vmatpush.msra.mxu0 %v280
    %v282 = vand.u32 %v118, 4294901760
    %283 = vmatpush.msra.mxu0 %v282
    %v284 = vand.u32 %v131, 4294901760
    %v285 = vsub.f32 %v131, %v284
    %v286 = vand.u32 %v285, 4294901760
    %287 = vmatmul.f32.gmra.mxu0 %v286
    %v288 = vpop.f32.mrf.mxu0
    %v289 = vadd.f32 %v259, %v288
    %290 = vdwg.mxu0
    %291 = vmatpush.msra.mxu0 0.0
    %292 = vmatpush.msra.mxu0 0.0
    %293 = vmatpush.msra.mxu0 0.0
    %294 = vmatpush.msra.mxu0 0.0
    %295 = vmatpush.msra.mxu0 0.0
    %296 = vmatpush.msra.mxu0 0.0
    %297 = vmatpush.msra.mxu0 0.0
    %298 = vmatpush.msra.mxu0 0.0
    %299 = vmatpush.msra.mxu0 0.0
    %v300 = vand.u32 %v135, 4294901760
    %v301 = vsub.f32 %v135, %v300
    %v302 = vand.u32 %v301, 4294901760
    %303 = vmatpush.msra.mxu0 %v302
    %v304 = vand.u32 %v123, 4294901760
    %v305 = vsub.f32 %v123, %v304
    %v306 = vand.u32 %v305, 4294901760
    %307 = vmatpush.msra.mxu0 %v306
    %v308 = vand.u32 %v122, 4294901760
    %v309 = vsub.f32 %v122, %v308
    %v310 = vand.u32 %v309, 4294901760
    %311 = vmatpush.msra.mxu0 %v310
    %v312 = vand.u32 %v121, 4294901760
    %v313 = vsub.f32 %v121, %v312
    %v314 = vand.u32 %v313, 4294901760
    %315 = vmatpush.msra.mxu0 %v314
    %v316 = vand.u32 %v120, 4294901760
    %v317 = vsub.f32 %v120, %v316
    %v318 = vand.u32 %v317, 4294901760
    %319 = vmatpush.msra.mxu0 %v318
    %v320 = vand.u32 %v119, 4294901760
    %v321 = vsub.f32 %v119, %v320
    %v322 = vand.u32 %v321, 4294901760
    %323 = vmatpush.msra.mxu0 %v322
    %v324 = vand.u32 %v118, 4294901760
    %v325 = vsub.f32 %v118, %v324
    %v326 = vand.u32 %v325, 4294901760
    %327 = vmatpush.msra.mxu0 %v326
    %v328 = vand.u32 %v131, 4294901760
    %329 = vmatmul.f32.gmra.mxu0 %v328
    %v330 = vpop.f32.mrf.mxu0
    %v331 = vadd.f32 %v289, %v330
    %332 = vdwg.mxu0
    %333 = vmatpush.msra.mxu0 0.0
    %334 = vmatpush.msra.mxu0 0.0
    %335 = vmatpush.msra.mxu0 0.0
    %336 = vmatpush.msra.mxu0 0.0
    %337 = vmatpush.msra.mxu0 0.0
    %338 = vmatpush.msra.mxu0 0.0
    %339 = vmatpush.msra.mxu0 0.0
    %340 = vmatpush.msra.mxu0 0.0
    %341 = vmatpush.msra.mxu0 0.0
    %v342 = vand.u32 %v135, 4294901760
    %343 = vmatpush.msra.mxu0 %v342
    %v344 = vand.u32 %v123, 4294901760
    %345 = vmatpush.msra.mxu0 %v344
    %v346 = vand.u32 %v122, 4294901760
    %347 = vmatpush.msra.mxu0 %v346
    %v348 = vand.u32 %v121, 4294901760
    %349 = vmatpush.msra.mxu0 %v348
    %v350 = vand.u32 %v120, 4294901760
    %351 = vmatpush.msra.mxu0 %v350
    %v352 = vand.u32 %v119, 4294901760
    %353 = vmatpush.msra.mxu0 %v352
    %v354 = vand.u32 %v118, 4294901760
    %355 = vmatpush.msra.mxu0 %v354
    %v356 = vand.u32 %v131, 4294901760
    %357 = vmatmul.f32.gmra.mxu0 %v356
    %v358 = vpop.f32.mrf.mxu0
    %v359 = vadd.f32 %v331, %v358
    %360 = vdwg.mxu0
    %v361 = vmax.f32 %v359, 0.0
    %v362 = vld [vmem:[#allocation4] sm:$0xff]
    %v363 = vld [vmem:[#allocation9] sm:$0xff]
    %v364 = vld [vmem:[#allocation9 + $0x8] sm:$0xff]
    %v365 = vld [vmem:[#allocation9 + $0x10] sm:$0xff]
    %v366 = vld [vmem:[#allocation9 + $0x18] sm:$0xff]
    %v367 = vld [vmem:[#allocation9 + $0x20] sm:$0xff]
    %v368 = vld [vmem:[#allocation9 + $0x28] sm:$0xff]
    %v369 = vld [vmem:[#allocation9 + $0x30] sm:$0xff]
    %v370 = vld [vmem:[#allocation9 + $0x38] sm:$0xff]
    %v371 = vld [vmem:[#allocation9 + $0x40] sm:$0xff]
    %v372 = vld [vmem:[#allocation9 + $0x48] sm:$0xff]
    %v373 = vld [vmem:[#allocation9 + $0x50] sm:$0xff]
    %v374 = vld [vmem:[#allocation9 + $0x58] sm:$0xff]
    %v375 = vld [vmem:[#allocation9 + $0x60] sm:$0xf]
    %v376 = vld [vmem:[%s5] sm:$0x1]
    %v378 = vperm.slane %v376, 0
    %vm380 = vcmask 818176
    %v382 = vsel %vm380, %v362, 0
    %vm384 = vcmask 1043456
    %v386 = vsel %vm384, %v375, 0
    %388 = vmatpush.msra.mxu0 0.0
    %389 = vmatpush.msra.mxu0 0.0
    %390 = vmatpush.msra.mxu0 0.0
    %v391 = vand.u32 %v386, 4294901760
    %392 = vmatpush.msra.mxu0 %v391
    %v393 = vand.u32 %v374, 4294901760
    %394 = vmatpush.msra.mxu0 %v393
    %v395 = vand.u32 %v373, 4294901760
    %396 = vmatpush.msra.mxu0 %v395
    %v397 = vand.u32 %v372, 4294901760
    %398 = vmatpush.msra.mxu0 %v397
    %v399 = vand.u32 %v371, 4294901760
    %400 = vmatpush.msra.mxu0 %v399
    %v401 = vand.u32 %v370, 4294901760
    %402 = vmatpush.msra.mxu0 %v401
    %v403 = vand.u32 %v369, 4294901760
    %404 = vmatpush.msra.mxu0 %v403
    %v405 = vand.u32 %v368, 4294901760
    %406 = vmatpush.msra.mxu0 %v405
    %v407 = vand.u32 %v367, 4294901760
    %408 = vmatpush.msra.mxu0 %v407
    %v409 = vand.u32 %v366, 4294901760
    %410 = vmatpush.msra.mxu0 %v409
    %v411 = vand.u32 %v365, 4294901760
    %412 = vmatpush.msra.mxu0 %v411
    %v413 = vand.u32 %v364, 4294901760
    %414 = vmatpush.msra.mxu0 %v413
    %v415 = vand.u32 %v363, 4294901760
    %416 = vmatpush.msra.mxu0 %v415
    %v417 = vand.u32 %v382, 4294901760
    %v418 = vsub.f32 %v382, %v417
    %v419 = vand.u32 %v418, 4294901760
    %v420 = vsub.f32 %v418, %v419
    %v421 = vand.u32 %v420, 4294901760
    %422 = vmatmul.f32.gmra.mxu0 %v421
    %v423 = vpop.f32.mrf.mxu0
    %v424 = vadd.f32 %v378, %v423
    %425 = vdwg.mxu0
    %426 = vmatpush.msra.mxu0 0.0
    %427 = vmatpush.msra.mxu0 0.0
    %428 = vmatpush.msra.mxu0 0.0
    %v429 = vand.u32 %v386, 4294901760
    %v430 = vsub.f32 %v386, %v429
    %v431 = vand.u32 %v430, 4294901760
    %v432 = vsub.f32 %v430, %v431
    %v433 = vand.u32 %v432, 4294901760
    %434 = vmatpush.msra.mxu0 %v433
    %v435 = vand.u32 %v374, 4294901760
    %v436 = vsub.f32 %v374, %v435
    %v437 = vand.u32 %v436, 4294901760
    %v438 = vsub.f32 %v436, %v437
    %v439 = vand.u32 %v438, 4294901760
    %440 = vmatpush.msra.mxu0 %v439
    %v441 = vand.u32 %v373, 4294901760
    %v442 = vsub.f32 %v373, %v441
    %v443 = vand.u32 %v442, 4294901760
    %v444 = vsub.f32 %v442, %v443
    %v445 = vand.u32 %v444, 4294901760
    %446 = vmatpush.msra.mxu0 %v445
    %v447 = vand.u32 %v372, 4294901760
    %v448 = vsub.f32 %v372, %v447
    %v449 = vand.u32 %v448, 4294901760
    %v450 = vsub.f32 %v448, %v449
    %v451 = vand.u32 %v450, 4294901760
    %452 = vmatpush.msra.mxu0 %v451
    %v453 = vand.u32 %v371, 4294901760
    %v454 = vsub.f32 %v371, %v453
    %v455 = vand.u32 %v454, 4294901760
    %v456 = vsub.f32 %v454, %v455
    %v457 = vand.u32 %v456, 4294901760
    %458 = vmatpush.msra.mxu0 %v457
    %v459 = vand.u32 %v370, 4294901760
    %v460 = vsub.f32 %v370, %v459
    %v461 = vand.u32 %v460, 4294901760
    %v462 = vsub.f32 %v460, %v461
    %v463 = vand.u32 %v462, 4294901760
    %464 = vmatpush.msra.mxu0 %v463
    %v465 = vand.u32 %v369, 4294901760
    %v466 = vsub.f32 %v369, %v465
    %v467 = vand.u32 %v466, 4294901760
    %v468 = vsub.f32 %v466, %v467
    %v469 = vand.u32 %v468, 4294901760
    %470 = vmatpush.msra.mxu0 %v469
    %v471 = vand.u32 %v368, 4294901760
    %v472 = vsub.f32 %v368, %v471
    %v473 = vand.u32 %v472, 4294901760
    %v474 = vsub.f32 %v472, %v473
    %v475 = vand.u32 %v474, 4294901760
    %476 = vmatpush.msra.mxu0 %v475
    %v477 = vand.u32 %v367, 4294901760
    %v478 = vsub.f32 %v367, %v477
    %v479 = vand.u32 %v478, 4294901760
    %v480 = vsub.f32 %v478, %v479
    %v481 = vand.u32 %v480, 4294901760
    %482 = vmatpush.msra.mxu0 %v481
    %v483 = vand.u32 %v366, 4294901760
    %v484 = vsub.f32 %v366, %v483
    %v485 = vand.u32 %v484, 4294901760
    %v486 = vsub.f32 %v484, %v485
    %v487 = vand.u32 %v486, 4294901760
    %488 = vmatpush.msra.mxu0 %v487
    %v489 = vand.u32 %v365, 4294901760
    %v490 = vsub.f32 %v365, %v489
    %v491 = vand.u32 %v490, 4294901760
    %v492 = vsub.f32 %v490, %v491
    %v493 = vand.u32 %v492, 4294901760
    %494 = vmatpush.msra.mxu0 %v493
    %v495 = vand.u32 %v364, 4294901760
    %v496 = vsub.f32 %v364, %v495
    %v497 = vand.u32 %v496, 4294901760
    %v498 = vsub.f32 %v496, %v497
    %v499 = vand.u32 %v498, 4294901760
    %500 = vmatpush.msra.mxu0 %v499
    %v501 = vand.u32 %v363, 4294901760
    %v502 = vsub.f32 %v363, %v501
    %v503 = vand.u32 %v502, 4294901760
    %v504 = vsub.f32 %v502, %v503
    %v505 = vand.u32 %v504, 4294901760
    %506 = vmatpush.msra.mxu0 %v505
    %v507 = vand.u32 %v382, 4294901760
    %508 = vmatmul.f32.gmra.mxu0 %v507
    %v509 = vpop.f32.mrf.mxu0
    %v510 = vadd.f32 %v424, %v509
    %511 = vdwg.mxu0
    %512 = vmatpush.msra.mxu0 0.0
    %513 = vmatpush.msra.mxu0 0.0
    %514 = vmatpush.msra.mxu0 0.0
    %v515 = vand.u32 %v386, 4294901760
    %v516 = vsub.f32 %v386, %v515
    %517 = vmatpush.msra.mxu0 %v516
    %v518 = vand.u32 %v374, 4294901760
    %v519 = vsub.f32 %v374, %v518
    %520 = vmatpush.msra.mxu0 %v519
    %v521 = vand.u32 %v373, 4294901760
    %v522 = vsub.f32 %v373, %v521
    %523 = vmatpush.msra.mxu0 %v522
    %v524 = vand.u32 %v372, 4294901760
    %v525 = vsub.f32 %v372, %v524
    %526 = vmatpush.msra.mxu0 %v525
    %v527 = vand.u32 %v371, 4294901760
    %v528 = vsub.f32 %v371, %v527
    %529 = vmatpush.msra.mxu0 %v528
    %v530 = vand.u32 %v370, 4294901760
    %v531 = vsub.f32 %v370, %v530
    %532 = vmatpush.msra.mxu0 %v531
    %v533 = vand.u32 %v369, 4294901760
    %v534 = vsub.f32 %v369, %v533
    %535 = vmatpush.msra.mxu0 %v534
    %v536 = vand.u32 %v368, 4294901760
    %v537 = vsub.f32 %v368, %v536
    %538 = vmatpush.msra.mxu0 %v537
    %v539 = vand.u32 %v367, 4294901760
    %v540 = vsub.f32 %v367, %v539
    %541 = vmatpush.msra.mxu0 %v540
    %v542 = vand.u32 %v366, 4294901760
    %v543 = vsub.f32 %v366, %v542
    %544 = vmatpush.msra.mxu0 %v543
    %v545 = vand.u32 %v365, 4294901760
    %v546 = vsub.f32 %v365, %v545
    %547 = vmatpush.msra.mxu0 %v546
    %v548 = vand.u32 %v364, 4294901760
    %v549 = vsub.f32 %v364, %v548
    %550 = vmatpush.msra.mxu0 %v549
    %v551 = vand.u32 %v363, 4294901760
    %v552 = vsub.f32 %v363, %v551
    %553 = vmatpush.msra.mxu0 %v552
    %v554 = vand.u32 %v382, 4294901760
    %v555 = vsub.f32 %v382, %v554
    %556 = vmatmul.f32.gmra.mxu0 %v555
    %v557 = vpop.f32.mrf.mxu0
    %v558 = vadd.f32 %v510, %v557
    %559 = vdwg.mxu0
    %560 = vmatpush.msra.mxu0 0.0
    %561 = vmatpush.msra.mxu0 0.0
    %562 = vmatpush.msra.mxu0 0.0
    %v563 = vand.u32 %v386, 4294901760
    %564 = vmatpush.msra.mxu0 %v563
    %v565 = vand.u32 %v374, 4294901760
    %566 = vmatpush.msra.mxu0 %v565
    %v567 = vand.u32 %v373, 4294901760
    %568 = vmatpush.msra.mxu0 %v567
    %v569 = vand.u32 %v372, 4294901760
    %570 = vmatpush.msra.mxu0 %v569
    %v571 = vand.u32 %v371, 4294901760
    %572 = vmatpush.msra.mxu0 %v571
    %v573 = vand.u32 %v370, 4294901760
    %574 = vmatpush.msra.mxu0 %v573
    %v575 = vand.u32 %v369, 4294901760
    %576 = vmatpush.msra.mxu0 %v575
    %v577 = vand.u32 %v368, 4294901760
    %578 = vmatpush.msra.mxu0 %v577
    %v579 = vand.u32 %v367, 4294901760
    %580 = vmatpush.msra.mxu0 %v579
    %v581 = vand.u32 %v366, 4294901760
    %582 = vmatpush.msra.mxu0 %v581
    %v583 = vand.u32 %v365, 4294901760
    %584 = vmatpush.msra.mxu0 %v583
    %v585 = vand.u32 %v364, 4294901760
    %586 = vmatpush.msra.mxu0 %v585
    %v587 = vand.u32 %v363, 4294901760
    %588 = vmatpush.msra.mxu0 %v587
    %v589 = vand.u32 %v382, 4294901760
    %v590 = vsub.f32 %v382, %v589
    %v591 = vand.u32 %v590, 4294901760
    %592 = vmatmul.f32.gmra.mxu0 %v591
    %v593 = vpop.f32.mrf.mxu0
    %v594 = vadd.f32 %v558, %v593
    %595 = vdwg.mxu0
    %596 = vmatpush.msra.mxu0 0.0
    %597 = vmatpush.msra.mxu0 0.0
    %598 = vmatpush.msra.mxu0 0.0
    %v599 = vand.u32 %v386, 4294901760
    %v600 = vsub.f32 %v386, %v599
    %v601 = vand.u32 %v600, 4294901760
    %602 = vmatpush.msra.mxu0 %v601
    %v603 = vand.u32 %v374, 4294901760
    %v604 = vsub.f32 %v374, %v603
    %v605 = vand.u32 %v604, 4294901760
    %606 = vmatpush.msra.mxu0 %v605
    %v607 = vand.u32 %v373, 4294901760
    %v608 = vsub.f32 %v373, %v607
    %v609 = vand.u32 %v608, 4294901760
    %610 = vmatpush.msra.mxu0 %v609
    %v611 = vand.u32 %v372, 4294901760
    %v612 = vsub.f32 %v372, %v611
    %v613 = vand.u32 %v612, 4294901760
    %614 = vmatpush.msra.mxu0 %v613
    %v615 = vand.u32 %v371, 4294901760
    %v616 = vsub.f32 %v371, %v615
    %v617 = vand.u32 %v616, 4294901760
    %618 = vmatpush.msra.mxu0 %v617
    %v619 = vand.u32 %v370, 4294901760
    %v620 = vsub.f32 %v370, %v619
    %v621 = vand.u32 %v620, 4294901760
    %622 = vmatpush.msra.mxu0 %v621
    %v623 = vand.u32 %v369, 4294901760
    %v624 = vsub.f32 %v369, %v623
    %v625 = vand.u32 %v624, 4294901760
    %626 = vmatpush.msra.mxu0 %v625
    %v627 = vand.u32 %v368, 4294901760
    %v628 = vsub.f32 %v368, %v627
    %v629 = vand.u32 %v628, 4294901760
    %630 = vmatpush.msra.mxu0 %v629
    %v631 = vand.u32 %v367, 4294901760
    %v632 = vsub.f32 %v367, %v631
    %v633 = vand.u32 %v632, 4294901760
    %634 = vmatpush.msra.mxu0 %v633
    %v635 = vand.u32 %v366, 4294901760
    %v636 = vsub.f32 %v366, %v635
    %v637 = vand.u32 %v636, 4294901760
    %638 = vmatpush.msra.mxu0 %v637
    %v639 = vand.u32 %v365, 4294901760
    %v640 = vsub.f32 %v365, %v639
    %v641 = vand.u32 %v640, 4294901760
    %642 = vmatpush.msra.mxu0 %v641
    %v643 = vand.u32 %v364, 4294901760
    %v644 = vsub.f32 %v364, %v643
    %v645 = vand.u32 %v644, 4294901760
    %646 = vmatpush.msra.mxu0 %v645
    %v647 = vand.u32 %v363, 4294901760
    %v648 = vsub.f32 %v363, %v647
    %v649 = vand.u32 %v648, 4294901760
    %650 = vmatpush.msra.mxu0 %v649
    %v651 = vand.u32 %v382, 4294901760
    %652 = vmatmul.f32.gmra.mxu0 %v651
    %v653 = vpop.f32.mrf.mxu0
    %v654 = vadd.f32 %v594, %v653
    %655 = vdwg.mxu0
    %656 = vmatpush.msra.mxu0 0.0
    %657 = vmatpush.msra.mxu0 0.0
    %658 = vmatpush.msra.mxu0 0.0
    %v659 = vand.u32 %v386, 4294901760
    %660 = vmatpush.msra.mxu0 %v659
    %v661 = vand.u32 %v374, 4294901760
    %662 = vmatpush.msra.mxu0 %v661
    %v663 = vand.u32 %v373, 4294901760
    %664 = vmatpush.msra.mxu0 %v663
    %v665 = vand.u32 %v372, 4294901760
    %666 = vmatpush.msra.mxu0 %v665
    %v667 = vand.u32 %v371, 4294901760
    %668 = vmatpush.msra.mxu0 %v667
    %v669 = vand.u32 %v370, 4294901760
    %670 = vmatpush.msra.mxu0 %v669
    %v671 = vand.u32 %v369, 4294901760
    %672 = vmatpush.msra.mxu0 %v671
    %v673 = vand.u32 %v368, 4294901760
    %674 = vmatpush.msra.mxu0 %v673
    %v675 = vand.u32 %v367, 4294901760
    %676 = vmatpush.msra.mxu0 %v675
    %v677 = vand.u32 %v366, 4294901760
    %678 = vmatpush.msra.mxu0 %v677
    %v679 = vand.u32 %v365, 4294901760
    %680 = vmatpush.msra.mxu0 %v679
    %v681 = vand.u32 %v364, 4294901760
    %682 = vmatpush.msra.mxu0 %v681
    %v683 = vand.u32 %v363, 4294901760
    %684 = vmatpush.msra.mxu0 %v683
    %v685 = vand.u32 %v382, 4294901760
    %686 = vmatmul.f32.gmra.mxu0 %v685
    %v687 = vpop.f32.mrf.mxu0
    %v688 = vadd.f32 %v654, %v687
    %689 = vdwg.mxu0
    %v690 = vmax.f32 %v688, 0.0
    %v691 = vld [vmem:[#allocation10] sm:$0xff]
    %v692 = vld [vmem:[#allocation10 + $0x8] sm:$0xff]
    %v693 = vld [vmem:[#allocation10 + $0x10] sm:$0xff]
    %v694 = vld [vmem:[#allocation10 + $0x18] sm:$0xff]
    %v695 = vld [vmem:[#allocation10 + $0x20] sm:$0xff]
    %v696 = vld [vmem:[#allocation10 + $0x28] sm:$0xff]
    %v697 = vld [vmem:[#allocation10 + $0x30] sm:$0xff]
    %v698 = vld [vmem:[#allocation10 + $0x38] sm:$0xff]
    %v699 = vld [vmem:[#allocation10 + $0x40] sm:$0xff]
    %v700 = vld [vmem:[#allocation10 + $0x48] sm:$0xff]
    %v701 = vld [vmem:[#allocation10 + $0x50] sm:$0xff]
    %v702 = vld [vmem:[#allocation10 + $0x58] sm:$0xff]
    %v703 = vld [vmem:[#allocation10 + $0x60] sm:$0xff]
    %v704 = vld [vmem:[#allocation10 + $0x68] sm:$0xff]
    %v705 = vld [vmem:[#allocation10 + $0x70] sm:$0xff]
    %v706 = vld [vmem:[#allocation10 + $0x78] sm:$0xff]
    %v707 = vld [vmem:[#allocation10 + $0x80] sm:$0xff]
    %v708 = vld [vmem:[#allocation10 + $0x88] sm:$0xff]
    %v709 = vld [vmem:[#allocation10 + $0x90] sm:$0xff]
    %v710 = vld [vmem:[#allocation10 + $0x98] sm:$0xff]
    %v711 = vld [vmem:[#allocation10 + $0xa0] sm:$0xff]
    %v712 = vld [vmem:[#allocation10 + $0xa8] sm:$0xff]
    %v713 = vld [vmem:[#allocation10 + $0xb0] sm:$0xff]
    %v714 = vld [vmem:[#allocation10 + $0xb8] sm:$0xff]
    %v715 = vld [vmem:[#allocation10 + $0xc0] sm:$0xff]
    %v716 = vld [vmem:[#allocation10 + $0xc8] sm:$0xff]
    %v717 = vld [vmem:[#allocation10 + $0xd0] sm:$0xff]
    %v718 = vld [vmem:[#allocation10 + $0xd8] sm:$0xff]
    %v719 = vld [vmem:[#allocation10 + $0xe0] sm:$0xff]
    %v720 = vld [vmem:[#allocation10 + $0xe8] sm:$0xff]
    %v721 = vld [vmem:[#allocation10 + $0xf0] sm:$0xff]
    %v722 = vld [vmem:[#allocation10 + $0xf8] sm:$0xff]
    %v723 = vld [vmem:[%s7] sm:$0x1]
    %v725 = vperm.slane %v723, 0
    %v727 = vand.u32 %v706, 4294901760
    %728 = vmatpush.msra.mxu0 %v727
    %v729 = vand.u32 %v705, 4294901760
    %730 = vmatpush.msra.mxu0 %v729
    %v731 = vand.u32 %v704, 4294901760
    %732 = vmatpush.msra.mxu0 %v731
    %v733 = vand.u32 %v703, 4294901760
    %734 = vmatpush.msra.mxu0 %v733
    %v735 = vand.u32 %v702, 4294901760
    %736 = vmatpush.msra.mxu0 %v735
    %v737 = vand.u32 %v701, 4294901760
    %738 = vmatpush.msra.mxu0 %v737
    %v739 = vand.u32 %v700, 4294901760
    %740 = vmatpush.msra.mxu0 %v739
    %v741 = vand.u32 %v699, 4294901760
    %742 = vmatpush.msra.mxu0 %v741
    %v743 = vand.u32 %v698, 4294901760
    %744 = vmatpush.msra.mxu0 %v743
    %v745 = vand.u32 %v697, 4294901760
    %746 = vmatpush.msra.mxu0 %v745
    %v747 = vand.u32 %v696, 4294901760
    %748 = vmatpush.msra.mxu0 %v747
    %v749 = vand.u32 %v695, 4294901760
    %750 = vmatpush.msra.mxu0 %v749
    %v751 = vand.u32 %v694, 4294901760
    %752 = vmatpush.msra.mxu0 %v751
    %v753 = vand.u32 %v693, 4294901760
    %754 = vmatpush.msra.mxu0 %v753
    %v755 = vand.u32 %v692, 4294901760
    %756 = vmatpush.msra.mxu0 %v755
    %v757 = vand.u32 %v691, 4294901760
    %758 = vmatpush.msra.mxu0 %v757
    %v759 = vand.u32 %v361, 4294901760
    %v760 = vsub.f32 %v361, %v759
    %v761 = vand.u32 %v760, 4294901760
    %v762 = vsub.f32 %v760, %v761
    %v763 = vand.u32 %v762, 4294901760
    %764 = vmatmul.f32.gmra.mxu0 %v763
    %v765 = vpop.f32.mrf.mxu0
    %v766 = vadd.f32 %v725, %v765
    %767 = vdwg.mxu0
    %v768 = vand.u32 %v706, 4294901760
    %v769 = vsub.f32 %v706, %v768
    %v770 = vand.u32 %v769, 4294901760
    %v771 = vsub.f32 %v769, %v770
    %v772 = vand.u32 %v771, 4294901760
    %773 = vmatpush.msra.mxu0 %v772
    %v774 = vand.u32 %v705, 4294901760
    %v775 = vsub.f32 %v705, %v774
    %v776 = vand.u32 %v775, 4294901760
    %v777 = vsub.f32 %v775, %v776
    %v778 = vand.u32 %v777, 4294901760
    %779 = vmatpush.msra.mxu0 %v778
    %v780 = vand.u32 %v704, 4294901760
    %v781 = vsub.f32 %v704, %v780
    %v782 = vand.u32 %v781, 4294901760
    %v783 = vsub.f32 %v781, %v782
    %v784 = vand.u32 %v783, 4294901760
    %785 = vmatpush.msra.mxu0 %v784
    %v786 = vand.u32 %v703, 4294901760
    %v787 = vsub.f32 %v703, %v786
    %v788 = vand.u32 %v787, 4294901760
    %v789 = vsub.f32 %v787, %v788
    %v790 = vand.u32 %v789, 4294901760
    %791 = vmatpush.msra.mxu0 %v790
    %v792 = vand.u32 %v702, 4294901760
    %v793 = vsub.f32 %v702, %v792
    %v794 = vand.u32 %v793, 4294901760
    %v795 = vsub.f32 %v793, %v794
    %v796 = vand.u32 %v795, 4294901760
    %797 = vmatpush.msra.mxu0 %v796
    %v798 = vand.u32 %v701, 4294901760
    %v799 = vsub.f32 %v701, %v798
    %v800 = vand.u32 %v799, 4294901760
    %v801 = vsub.f32 %v799, %v800
    %v802 = vand.u32 %v801, 4294901760
    %803 = vmatpush.msra.mxu0 %v802
    %v804 = vand.u32 %v700, 4294901760
    %v805 = vsub.f32 %v700, %v804
    %v806 = vand.u32 %v805, 4294901760
    %v807 = vsub.f32 %v805, %v806
    %v808 = vand.u32 %v807, 4294901760
    %809 = vmatpush.msra.mxu0 %v808
    %v810 = vand.u32 %v699, 4294901760
    %v811 = vsub.f32 %v699, %v810
    %v812 = vand.u32 %v811, 4294901760
    %v813 = vsub.f32 %v811, %v812
    %v814 = vand.u32 %v813, 4294901760
    %815 = vmatpush.msra.mxu0 %v814
    %v816 = vand.u32 %v698, 4294901760
    %v817 = vsub.f32 %v698, %v816
    %v818 = vand.u32 %v817, 4294901760
    %v819 = vsub.f32 %v817, %v818
    %v820 = vand.u32 %v819, 4294901760
    %821 = vmatpush.msra.mxu0 %v820
    %v822 = vand.u32 %v697, 4294901760
    %v823 = vsub.f32 %v697, %v822
    %v824 = vand.u32 %v823, 4294901760
    %v825 = vsub.f32 %v823, %v824
    %v826 = vand.u32 %v825, 4294901760
    %827 = vmatpush.msra.mxu0 %v826
    %v828 = vand.u32 %v696, 4294901760
    %v829 = vsub.f32 %v696, %v828
    %v830 = vand.u32 %v829, 4294901760
    %v831 = vsub.f32 %v829, %v830
    %v832 = vand.u32 %v831, 4294901760
    %833 = vmatpush.msra.mxu0 %v832
    %v834 = vand.u32 %v695, 4294901760
    %v835 = vsub.f32 %v695, %v834
    %v836 = vand.u32 %v835, 4294901760
    %v837 = vsub.f32 %v835, %v836
    %v838 = vand.u32 %v837, 4294901760
    %839 = vmatpush.msra.mxu0 %v838
    %v840 = vand.u32 %v694, 4294901760
    %v841 = vsub.f32 %v694, %v840
    %v842 = vand.u32 %v841, 4294901760
    %v843 = vsub.f32 %v841, %v842
    %v844 = vand.u32 %v843, 4294901760
    %845 = vmatpush.msra.mxu0 %v844
    %v846 = vand.u32 %v693, 4294901760
    %v847 = vsub.f32 %v693, %v846
    %v848 = vand.u32 %v847, 4294901760
    %v849 = vsub.f32 %v847, %v848
    %v850 = vand.u32 %v849, 4294901760
    %851 = vmatpush.msra.mxu0 %v850
    %v852 = vand.u32 %v692, 4294901760
    %v853 = vsub.f32 %v692, %v852
    %v854 = vand.u32 %v853, 4294901760
    %v855 = vsub.f32 %v853, %v854
    %v856 = vand.u32 %v855, 4294901760
    %857 = vmatpush.msra.mxu0 %v856
    %v858 = vand.u32 %v691, 4294901760
    %v859 = vsub.f32 %v691, %v858
    %v860 = vand.u32 %v859, 4294901760
    %v861 = vsub.f32 %v859, %v860
    %v862 = vand.u32 %v861, 4294901760
    %863 = vmatpush.msra.mxu0 %v862
    %v864 = vand.u32 %v361, 4294901760
    %865 = vmatmul.f32.gmra.mxu0 %v864
    %v866 = vpop.f32.mrf.mxu0
    %v867 = vadd.f32 %v766, %v866
    %868 = vdwg.mxu0
    %v869 = vand.u32 %v706, 4294901760
    %v870 = vsub.f32 %v706, %v869
    %871 = vmatpush.msra.mxu0 %v870
    %v872 = vand.u32 %v705, 4294901760
    %v873 = vsub.f32 %v705, %v872
    %874 = vmatpush.msra.mxu0 %v873
    %v875 = vand.u32 %v704, 4294901760
    %v876 = vsub.f32 %v704, %v875
    %877 = vmatpush.msra.mxu0 %v876
    %v878 = vand.u32 %v703, 4294901760
    %v879 = vsub.f32 %v703, %v878
    %880 = vmatpush.msra.mxu0 %v879
    %v881 = vand.u32 %v702, 4294901760
    %v882 = vsub.f32 %v702, %v881
    %883 = vmatpush.msra.mxu0 %v882
    %v884 = vand.u32 %v701, 4294901760
    %v885 = vsub.f32 %v701, %v884
    %886 = vmatpush.msra.mxu0 %v885
    %v887 = vand.u32 %v700, 4294901760
    %v888 = vsub.f32 %v700, %v887
    %889 = vmatpush.msra.mxu0 %v888
    %v890 = vand.u32 %v699, 4294901760
    %v891 = vsub.f32 %v699, %v890
    %892 = vmatpush.msra.mxu0 %v891
    %v893 = vand.u32 %v698, 4294901760
    %v894 = vsub.f32 %v698, %v893
    %895 = vmatpush.msra.mxu0 %v894
    %v896 = vand.u32 %v697, 4294901760
    %v897 = vsub.f32 %v697, %v896
    %898 = vmatpush.msra.mxu0 %v897
    %v899 = vand.u32 %v696, 4294901760
    %v900 = vsub.f32 %v696, %v899
    %901 = vmatpush.msra.mxu0 %v900
    %v902 = vand.u32 %v695, 4294901760
    %v903 = vsub.f32 %v695, %v902
    %904 = vmatpush.msra.mxu0 %v903
    %v905 = vand.u32 %v694, 4294901760
    %v906 = vsub.f32 %v694, %v905
    %907 = vmatpush.msra.mxu0 %v906
    %v908 = vand.u32 %v693, 4294901760
    %v909 = vsub.f32 %v693, %v908
    %910 = vmatpush.msra.mxu0 %v909
    %v911 = vand.u32 %v692, 4294901760
    %v912 = vsub.f32 %v692, %v911
    %913 = vmatpush.msra.mxu0 %v912
    %v914 = vand.u32 %v691, 4294901760
    %v915 = vsub.f32 %v691, %v914
    %916 = vmatpush.msra.mxu0 %v915
    %v917 = vand.u32 %v361, 4294901760
    %v918 = vsub.f32 %v361, %v917
    %919 = vmatmul.f32.gmra.mxu0 %v918
    %v920 = vpop.f32.mrf.mxu0
    %v921 = vadd.f32 %v867, %v920
    %922 = vdwg.mxu0
    %v923 = vand.u32 %v706, 4294901760
    %924 = vmatpush.msra.mxu0 %v923
    %v925 = vand.u32 %v705, 4294901760
    %926 = vmatpush.msra.mxu0 %v925
    %v927 = vand.u32 %v704, 4294901760
    %928 = vmatpush.msra.mxu0 %v927
    %v929 = vand.u32 %v703, 4294901760
    %930 = vmatpush.msra.mxu0 %v929
    %v931 = vand.u32 %v702, 4294901760
    %932 = vmatpush.msra.mxu0 %v931
    %v933 = vand.u32 %v701, 4294901760
    %934 = vmatpush.msra.mxu0 %v933
    %v935 = vand.u32 %v700, 4294901760
    %936 = vmatpush.msra.mxu0 %v935
    %v937 = vand.u32 %v699, 4294901760
    %938 = vmatpush.msra.mxu0 %v937
    %v939 = vand.u32 %v698, 4294901760
    %940 = vmatpush.msra.mxu0 %v939
    %v941 = vand.u32 %v697, 4294901760
    %942 = vmatpush.msra.mxu0 %v941
    %v943 = vand.u32 %v696, 4294901760
    %944 = vmatpush.msra.mxu0 %v943
    %v945 = vand.u32 %v695, 4294901760
    %946 = vmatpush.msra.mxu0 %v945
    %v947 = vand.u32 %v694, 4294901760
    %948 = vmatpush.msra.mxu0 %v947
    %v949 = vand.u32 %v693, 4294901760
    %950 = vmatpush.msra.mxu0 %v949
    %v951 = vand.u32 %v692, 4294901760
    %952 = vmatpush.msra.mxu0 %v951
    %v953 = vand.u32 %v691, 4294901760
    %954 = vmatpush.msra.mxu0 %v953
    %v955 = vand.u32 %v361, 4294901760
    %v956 = vsub.f32 %v361, %v955
    %v957 = vand.u32 %v956, 4294901760
    %958 = vmatmul.f32.gmra.mxu0 %v957
    %v959 = vpop.f32.mrf.mxu0
    %v960 = vadd.f32 %v921, %v959
    %961 = vdwg.mxu0
    %v962 = vand.u32 %v706, 4294901760
    %v963 = vsub.f32 %v706, %v962
    %v964 = vand.u32 %v963, 4294901760
    %965 = vmatpush.msra.mxu0 %v964
    %v966 = vand.u32 %v705, 4294901760
    %v967 = vsub.f32 %v705, %v966
    %v968 = vand.u32 %v967, 4294901760
    %969 = vmatpush.msra.mxu0 %v968
    %v970 = vand.u32 %v704, 4294901760
    %v971 = vsub.f32 %v704, %v970
    %v972 = vand.u32 %v971, 4294901760
    %973 = vmatpush.msra.mxu0 %v972
    %v974 = vand.u32 %v703, 4294901760
    %v975 = vsub.f32 %v703, %v974
    %v976 = vand.u32 %v975, 4294901760
    %977 = vmatpush.msra.mxu0 %v976
    %v978 = vand.u32 %v702, 4294901760
    %v979 = vsub.f32 %v702, %v978
    %v980 = vand.u32 %v979, 4294901760
    %981 = vmatpush.msra.mxu0 %v980
    %v982 = vand.u32 %v701, 4294901760
    %v983 = vsub.f32 %v701, %v982
    %v984 = vand.u32 %v983, 4294901760
    %985 = vmatpush.msra.mxu0 %v984
    %v986 = vand.u32 %v700, 4294901760
    %v987 = vsub.f32 %v700, %v986
    %v988 = vand.u32 %v987, 4294901760
    %989 = vmatpush.msra.mxu0 %v988
    %v990 = vand.u32 %v699, 4294901760
    %v991 = vsub.f32 %v699, %v990
    %v992 = vand.u32 %v991, 4294901760
    %993 = vmatpush.msra.mxu0 %v992
    %v994 = vand.u32 %v698, 4294901760
    %v995 = vsub.f32 %v698, %v994
    %v996 = vand.u32 %v995, 4294901760
    %997 = vmatpush.msra.mxu0 %v996
    %v998 = vand.u32 %v697, 4294901760
    %v999 = vsub.f32 %v697, %v998
    %v1000 = vand.u32 %v999, 4294901760
    %1001 = vmatpush.msra.mxu0 %v1000
    %v1002 = vand.u32 %v696, 4294901760
    %v1003 = vsub.f32 %v696, %v1002
    %v1004 = vand.u32 %v1003, 4294901760
    %1005 = vmatpush.msra.mxu0 %v1004
    %v1006 = vand.u32 %v695, 4294901760
    %v1007 = vsub.f32 %v695, %v1006
    %v1008 = vand.u32 %v1007, 4294901760
    %1009 = vmatpush.msra.mxu0 %v1008
    %v1010 = vand.u32 %v694, 4294901760
    %v1011 = vsub.f32 %v694, %v1010
    %v1012 = vand.u32 %v1011, 4294901760
    %1013 = vmatpush.msra.mxu0 %v1012
    %v1014 = vand.u32 %v693, 4294901760
    %v1015 = vsub.f32 %v693, %v1014
    %v1016 = vand.u32 %v1015, 4294901760
    %1017 = vmatpush.msra.mxu0 %v1016
    %v1018 = vand.u32 %v692, 4294901760
    %v1019 = vsub.f32 %v692, %v1018
    %v1020 = vand.u32 %v1019, 4294901760
    %1021 = vmatpush.msra.mxu0 %v1020
    %v1022 = vand.u32 %v691, 4294901760
    %v1023 = vsub.f32 %v691, %v1022
    %v1024 = vand.u32 %v1023, 4294901760
    %1025 = vmatpush.msra.mxu0 %v1024
    %v1026 = vand.u32 %v361, 4294901760
    %1027 = vmatmul.f32.gmra.mxu0 %v1026
    %v1028 = vpop.f32.mrf.mxu0
    %v1029 = vadd.f32 %v960, %v1028
    %1030 = vdwg.mxu0
    %v1031 = vand.u32 %v706, 4294901760
    %1032 = vmatpush.msra.mxu0 %v1031
    %v1033 = vand.u32 %v705, 4294901760
    %1034 = vmatpush.msra.mxu0 %v1033
    %v1035 = vand.u32 %v704, 4294901760
    %1036 = vmatpush.msra.mxu0 %v1035
    %v1037 = vand.u32 %v703, 4294901760
    %1038 = vmatpush.msra.mxu0 %v1037
    %v1039 = vand.u32 %v702, 4294901760
    %1040 = vmatpush.msra.mxu0 %v1039
    %v1041 = vand.u32 %v701, 4294901760
    %1042 = vmatpush.msra.mxu0 %v1041
    %v1043 = vand.u32 %v700, 4294901760
    %1044 = vmatpush.msra.mxu0 %v1043
    %v1045 = vand.u32 %v699, 4294901760
    %1046 = vmatpush.msra.mxu0 %v1045
    %v1047 = vand.u32 %v698, 4294901760
    %1048 = vmatpush.msra.mxu0 %v1047
    %v1049 = vand.u32 %v697, 4294901760
    %1050 = vmatpush.msra.mxu0 %v1049
    %v1051 = vand.u32 %v696, 4294901760
    %1052 = vmatpush.msra.mxu0 %v1051
    %v1053 = vand.u32 %v695, 4294901760
    %1054 = vmatpush.msra.mxu0 %v1053
    %v1055 = vand.u32 %v694, 4294901760
    %1056 = vmatpush.msra.mxu0 %v1055
    %v1057 = vand.u32 %v693, 4294901760
    %1058 = vmatpush.msra.mxu0 %v1057
    %v1059 = vand.u32 %v692, 4294901760
    %1060 = vmatpush.msra.mxu0 %v1059
    %v1061 = vand.u32 %v691, 4294901760
    %1062 = vmatpush.msra.mxu0 %v1061
    %v1063 = vand.u32 %v361, 4294901760
    %1064 = vmatmul.f32.gmra.mxu0 %v1063
    %v1065 = vpop.f32.mrf.mxu0
    %v1066 = vadd.f32 %v1029, %v1065
    %1067 = vdwg.mxu0
    %v1068 = vand.u32 %v722, 4294901760
    %1069 = vmatpush.msra.mxu0 %v1068
    %v1070 = vand.u32 %v721, 4294901760
    %1071 = vmatpush.msra.mxu0 %v1070
    %v1072 = vand.u32 %v720, 4294901760
    %1073 = vmatpush.msra.mxu0 %v1072
    %v1074 = vand.u32 %v719, 4294901760
    %1075 = vmatpush.msra.mxu0 %v1074
    %v1076 = vand.u32 %v718, 4294901760
    %1077 = vmatpush.msra.mxu0 %v1076
    %v1078 = vand.u32 %v717, 4294901760
    %1079 = vmatpush.msra.mxu0 %v1078
    %v1080 = vand.u32 %v716, 4294901760
    %1081 = vmatpush.msra.mxu0 %v1080
    %v1082 = vand.u32 %v715, 4294901760
    %1083 = vmatpush.msra.mxu0 %v1082
    %v1084 = vand.u32 %v714, 4294901760
    %1085 = vmatpush.msra.mxu0 %v1084
    %v1086 = vand.u32 %v713, 4294901760
    %1087 = vmatpush.msra.mxu0 %v1086
    %v1088 = vand.u32 %v712, 4294901760
    %1089 = vmatpush.msra.mxu0 %v1088
    %v1090 = vand.u32 %v711, 4294901760
    %1091 = vmatpush.msra.mxu0 %v1090
    %v1092 = vand.u32 %v710, 4294901760
    %1093 = vmatpush.msra.mxu0 %v1092
    %v1094 = vand.u32 %v709, 4294901760
    %1095 = vmatpush.msra.mxu0 %v1094
    %v1096 = vand.u32 %v708, 4294901760
    %1097 = vmatpush.msra.mxu0 %v1096
    %v1098 = vand.u32 %v707, 4294901760
    %1099 = vmatpush.msra.mxu0 %v1098
    %v1100 = vand.u32 %v690, 4294901760
    %v1101 = vsub.f32 %v690, %v1100
    %v1102 = vand.u32 %v1101, 4294901760
    %v1103 = vsub.f32 %v1101, %v1102
    %v1104 = vand.u32 %v1103, 4294901760
    %1105 = vmatmul.f32.gmra.mxu0 %v1104
    %v1106 = vpop.f32.mrf.mxu0
    %v1107 = vadd.f32 %v1066, %v1106
    %1108 = vdwg.mxu0
    %v1109 = vand.u32 %v722, 4294901760
    %v1110 = vsub.f32 %v722, %v1109
    %v1111 = vand.u32 %v1110, 4294901760
    %v1112 = vsub.f32 %v1110, %v1111
    %v1113 = vand.u32 %v1112, 4294901760
    %1114 = vmatpush.msra.mxu0 %v1113
    %v1115 = vand.u32 %v721, 4294901760
    %v1116 = vsub.f32 %v721, %v1115
    %v1117 = vand.u32 %v1116, 4294901760
    %v1118 = vsub.f32 %v1116, %v1117
    %v1119 = vand.u32 %v1118, 4294901760
    %1120 = vmatpush.msra.mxu0 %v1119
    %v1121 = vand.u32 %v720, 4294901760
    %v1122 = vsub.f32 %v720, %v1121
    %v1123 = vand.u32 %v1122, 4294901760
    %v1124 = vsub.f32 %v1122, %v1123
    %v1125 = vand.u32 %v1124, 4294901760
    %1126 = vmatpush.msra.mxu0 %v1125
    %v1127 = vand.u32 %v719, 4294901760
    %v1128 = vsub.f32 %v719, %v1127
    %v1129 = vand.u32 %v1128, 4294901760
    %v1130 = vsub.f32 %v1128, %v1129
    %v1131 = vand.u32 %v1130, 4294901760
    %1132 = vmatpush.msra.mxu0 %v1131
    %v1133 = vand.u32 %v718, 4294901760
    %v1134 = vsub.f32 %v718, %v1133
    %v1135 = vand.u32 %v1134, 4294901760
    %v1136 = vsub.f32 %v1134, %v1135
    %v1137 = vand.u32 %v1136, 4294901760
    %1138 = vmatpush.msra.mxu0 %v1137
    %v1139 = vand.u32 %v717, 4294901760
    %v1140 = vsub.f32 %v717, %v1139
    %v1141 = vand.u32 %v1140, 4294901760
    %v1142 = vsub.f32 %v1140, %v1141
    %v1143 = vand.u32 %v1142, 4294901760
    %1144 = vmatpush.msra.mxu0 %v1143
    %v1145 = vand.u32 %v716, 4294901760
    %v1146 = vsub.f32 %v716, %v1145
    %v1147 = vand.u32 %v1146, 4294901760
    %v1148 = vsub.f32 %v1146, %v1147
    %v1149 = vand.u32 %v1148, 4294901760
    %1150 = vmatpush.msra.mxu0 %v1149
    %v1151 = vand.u32 %v715, 4294901760
    %v1152 = vsub.f32 %v715, %v1151
    %v1153 = vand.u32 %v1152, 4294901760
    %v1154 = vsub.f32 %v1152, %v1153
    %v1155 = vand.u32 %v1154, 4294901760
    %1156 = vmatpush.msra.mxu0 %v1155
    %v1157 = vand.u32 %v714, 4294901760
    %v1158 = vsub.f32 %v714, %v1157
    %v1159 = vand.u32 %v1158, 4294901760
    %v1160 = vsub.f32 %v1158, %v1159
    %v1161 = vand.u32 %v1160, 4294901760
    %1162 = vmatpush.msra.mxu0 %v1161
    %v1163 = vand.u32 %v713, 4294901760
    %v1164 = vsub.f32 %v713, %v1163
    %v1165 = vand.u32 %v1164, 4294901760
    %v1166 = vsub.f32 %v1164, %v1165
    %v1167 = vand.u32 %v1166, 4294901760
    %1168 = vmatpush.msra.mxu0 %v1167
    %v1169 = vand.u32 %v712, 4294901760
    %v1170 = vsub.f32 %v712, %v1169
    %v1171 = vand.u32 %v1170, 4294901760
    %v1172 = vsub.f32 %v1170, %v1171
    %v1173 = vand.u32 %v1172, 4294901760
    %1174 = vmatpush.msra.mxu0 %v1173
    %v1175 = vand.u32 %v711, 4294901760
    %v1176 = vsub.f32 %v711, %v1175
    %v1177 = vand.u32 %v1176, 4294901760
    %v1178 = vsub.f32 %v1176, %v1177
    %v1179 = vand.u32 %v1178, 4294901760
    %1180 = vmatpush.msra.mxu0 %v1179
    %v1181 = vand.u32 %v710, 4294901760
    %v1182 = vsub.f32 %v710, %v1181
    %v1183 = vand.u32 %v1182, 4294901760
    %v1184 = vsub.f32 %v1182, %v1183
    %v1185 = vand.u32 %v1184, 4294901760
    %1186 = vmatpush.msra.mxu0 %v1185
    %v1187 = vand.u32 %v709, 4294901760
    %v1188 = vsub.f32 %v709, %v1187
    %v1189 = vand.u32 %v1188, 4294901760
    %v1190 = vsub.f32 %v1188, %v1189
    %v1191 = vand.u32 %v1190, 4294901760
    %1192 = vmatpush.msra.mxu0 %v1191
    %v1193 = vand.u32 %v708, 4294901760
    %v1194 = vsub.f32 %v708, %v1193
    %v1195 = vand.u32 %v1194, 4294901760
    %v1196 = vsub.f32 %v1194, %v1195
    %v1197 = vand.u32 %v1196, 4294901760
    %1198 = vmatpush.msra.mxu0 %v1197
    %v1199 = vand.u32 %v707, 4294901760
    %v1200 = vsub.f32 %v707, %v1199
    %v1201 = vand.u32 %v1200, 4294901760
    %v1202 = vsub.f32 %v1200, %v1201
    %v1203 = vand.u32 %v1202, 4294901760
    %1204 = vmatpush.msra.mxu0 %v1203
    %v1205 = vand.u32 %v690, 4294901760
    %1206 = vmatmul.f32.gmra.mxu0 %v1205
    %v1207 = vpop.f32.mrf.mxu0
    %v1208 = vadd.f32 %v1107, %v1207
    %1209 = vdwg.mxu0
    %v1210 = vand.u32 %v722, 4294901760
    %v1211 = vsub.f32 %v722, %v1210
    %1212 = vmatpush.msra.mxu0 %v1211
    %v1213 = vand.u32 %v721, 4294901760
    %v1214 = vsub.f32 %v721, %v1213
    %1215 = vmatpush.msra.mxu0 %v1214
    %v1216 = vand.u32 %v720, 4294901760
    %v1217 = vsub.f32 %v720, %v1216
    %1218 = vmatpush.msra.mxu0 %v1217
    %v1219 = vand.u32 %v719, 4294901760
    %v1220 = vsub.f32 %v719, %v1219
    %1221 = vmatpush.msra.mxu0 %v1220
    %v1222 = vand.u32 %v718, 4294901760
    %v1223 = vsub.f32 %v718, %v1222
    %1224 = vmatpush.msra.mxu0 %v1223
    %v1225 = vand.u32 %v717, 4294901760
    %v1226 = vsub.f32 %v717, %v1225
    %1227 = vmatpush.msra.mxu0 %v1226
    %v1228 = vand.u32 %v716, 4294901760
    %v1229 = vsub.f32 %v716, %v1228
    %1230 = vmatpush.msra.mxu0 %v1229
    %v1231 = vand.u32 %v715, 4294901760
    %v1232 = vsub.f32 %v715, %v1231
    %1233 = vmatpush.msra.mxu0 %v1232
    %v1234 = vand.u32 %v714, 4294901760
    %v1235 = vsub.f32 %v714, %v1234
    %1236 = vmatpush.msra.mxu0 %v1235
    %v1237 = vand.u32 %v713, 4294901760
    %v1238 = vsub.f32 %v713, %v1237
    %1239 = vmatpush.msra.mxu0 %v1238
    %v1240 = vand.u32 %v712, 4294901760
    %v1241 = vsub.f32 %v712, %v1240
    %1242 = vmatpush.msra.mxu0 %v1241
    %v1243 = vand.u32 %v711, 4294901760
    %v1244 = vsub.f32 %v711, %v1243
    %1245 = vmatpush.msra.mxu0 %v1244
    %v1246 = vand.u32 %v710, 4294901760
    %v1247 = vsub.f32 %v710, %v1246
    %1248 = vmatpush.msra.mxu0 %v1247
    %v1249 = vand.u32 %v709, 4294901760
    %v1250 = vsub.f32 %v709, %v1249
    %1251 = vmatpush.msra.mxu0 %v1250
    %v1252 = vand.u32 %v708, 4294901760
    %v1253 = vsub.f32 %v708, %v1252
    %1254 = vmatpush.msra.mxu0 %v1253
    %v1255 = vand.u32 %v707, 4294901760
    %v1256 = vsub.f32 %v707, %v1255
    %1257 = vmatpush.msra.mxu0 %v1256
    %v1258 = vand.u32 %v690, 4294901760
    %v1259 = vsub.f32 %v690, %v1258
    %1260 = vmatmul.f32.gmra.mxu0 %v1259
    %v1261 = vpop.f32.mrf.mxu0
    %v1262 = vadd.f32 %v1208, %v1261
    %1263 = vdwg.mxu0
    %v1264 = vand.u32 %v722, 4294901760
    %1265 = vmatpush.msra.mxu0 %v1264
    %v1266 = vand.u32 %v721, 4294901760
    %1267 = vmatpush.msra.mxu0 %v1266
    %v1268 = vand.u32 %v720, 4294901760
    %1269 = vmatpush.msra.mxu0 %v1268
    %v1270 = vand.u32 %v719, 4294901760
    %1271 = vmatpush.msra.mxu0 %v1270
    %v1272 = vand.u32 %v718, 4294901760
    %1273 = vmatpush.msra.mxu0 %v1272
    %v1274 = vand.u32 %v717, 4294901760
    %1275 = vmatpush.msra.mxu0 %v1274
    %v1276 = vand.u32 %v716, 4294901760
    %1277 = vmatpush.msra.mxu0 %v1276
    %v1278 = vand.u32 %v715, 4294901760
    %1279 = vmatpush.msra.mxu0 %v1278
    %v1280 = vand.u32 %v714, 4294901760
    %1281 = vmatpush.msra.mxu0 %v1280
    %v1282 = vand.u32 %v713, 4294901760
    %1283 = vmatpush.msra.mxu0 %v1282
    %v1284 = vand.u32 %v712, 4294901760
    %1285 = vmatpush.msra.mxu0 %v1284
    %v1286 = vand.u32 %v711, 4294901760
    %1287 = vmatpush.msra.mxu0 %v1286
    %v1288 = vand.u32 %v710, 4294901760
    %1289 = vmatpush.msra.mxu0 %v1288
    %v1290 = vand.u32 %v709, 4294901760
    %1291 = vmatpush.msra.mxu0 %v1290
    %v1292 = vand.u32 %v708, 4294901760
    %1293 = vmatpush.msra.mxu0 %v1292
    %v1294 = vand.u32 %v707, 4294901760
    %1295 = vmatpush.msra.mxu0 %v1294
    %v1296 = vand.u32 %v690, 4294901760
    %v1297 = vsub.f32 %v690, %v1296
    %v1298 = vand.u32 %v1297, 4294901760
    %1299 = vmatmul.f32.gmra.mxu0 %v1298
    %v1300 = vpop.f32.mrf.mxu0
    %v1301 = vadd.f32 %v1262, %v1300
    %1302 = vdwg.mxu0
    %v1303 = vand.u32 %v722, 4294901760
    %v1304 = vsub.f32 %v722, %v1303
    %v1305 = vand.u32 %v1304, 4294901760
    %1306 = vmatpush.msra.mxu0 %v1305
    %v1307 = vand.u32 %v721, 4294901760
    %v1308 = vsub.f32 %v721, %v1307
    %v1309 = vand.u32 %v1308, 4294901760
    %1310 = vmatpush.msra.mxu0 %v1309
    %v1311 = vand.u32 %v720, 4294901760
    %v1312 = vsub.f32 %v720, %v1311
    %v1313 = vand.u32 %v1312, 4294901760
    %1314 = vmatpush.msra.mxu0 %v1313
    %v1315 = vand.u32 %v719, 4294901760
    %v1316 = vsub.f32 %v719, %v1315
    %v1317 = vand.u32 %v1316, 4294901760
    %1318 = vmatpush.msra.mxu0 %v1317
    %v1319 = vand.u32 %v718, 4294901760
    %v1320 = vsub.f32 %v718, %v1319
    %v1321 = vand.u32 %v1320, 4294901760
    %1322 = vmatpush.msra.mxu0 %v1321
    %v1323 = vand.u32 %v717, 4294901760
    %v1324 = vsub.f32 %v717, %v1323
    %v1325 = vand.u32 %v1324, 4294901760
    %1326 = vmatpush.msra.mxu0 %v1325
    %v1327 = vand.u32 %v716, 4294901760
    %v1328 = vsub.f32 %v716, %v1327
    %v1329 = vand.u32 %v1328, 4294901760
    %1330 = vmatpush.msra.mxu0 %v1329
    %v1331 = vand.u32 %v715, 4294901760
    %v1332 = vsub.f32 %v715, %v1331
    %v1333 = vand.u32 %v1332, 4294901760
    %1334 = vmatpush.msra.mxu0 %v1333
    %v1335 = vand.u32 %v714, 4294901760
    %v1336 = vsub.f32 %v714, %v1335
    %v1337 = vand.u32 %v1336, 4294901760
    %1338 = vmatpush.msra.mxu0 %v1337
    %v1339 = vand.u32 %v713, 4294901760
    %v1340 = vsub.f32 %v713, %v1339
    %v1341 = vand.u32 %v1340, 4294901760
    %1342 = vmatpush.msra.mxu0 %v1341
    %v1343 = vand.u32 %v712, 4294901760
    %v1344 = vsub.f32 %v712, %v1343
    %v1345 = vand.u32 %v1344, 4294901760
    %1346 = vmatpush.msra.mxu0 %v1345
    %v1347 = vand.u32 %v711, 4294901760
    %v1348 = vsub.f32 %v711, %v1347
    %v1349 = vand.u32 %v1348, 4294901760
    %1350 = vmatpush.msra.mxu0 %v1349
    %v1351 = vand.u32 %v710, 4294901760
    %v1352 = vsub.f32 %v710, %v1351
    %v1353 = vand.u32 %v1352, 4294901760
    %1354 = vmatpush.msra.mxu0 %v1353
    %v1355 = vand.u32 %v709, 4294901760
    %v1356 = vsub.f32 %v709, %v1355
    %v1357 = vand.u32 %v1356, 4294901760
    %1358 = vmatpush.msra.mxu0 %v1357
    %v1359 = vand.u32 %v708, 4294901760
    %v1360 = vsub.f32 %v708, %v1359
    %v1361 = vand.u32 %v1360, 4294901760
    %1362 = vmatpush.msra.mxu0 %v1361
    %v1363 = vand.u32 %v707, 4294901760
    %v1364 = vsub.f32 %v707, %v1363
    %v1365 = vand.u32 %v1364, 4294901760
    %1366 = vmatpush.msra.mxu0 %v1365
    %v1367 = vand.u32 %v690, 4294901760
    %1368 = vmatmul.f32.gmra.mxu0 %v1367
    %v1369 = vpop.f32.mrf.mxu0
    %v1370 = vadd.f32 %v1301, %v1369
    %1371 = vdwg.mxu0
    %v1372 = vand.u32 %v722, 4294901760
    %1373 = vmatpush.msra.mxu0 %v1372
    %v1374 = vand.u32 %v721, 4294901760
    %1375 = vmatpush.msra.mxu0 %v1374
    %v1376 = vand.u32 %v720, 4294901760
    %1377 = vmatpush.msra.mxu0 %v1376
    %v1378 = vand.u32 %v719, 4294901760
    %1379 = vmatpush.msra.mxu0 %v1378
    %v1380 = vand.u32 %v718, 4294901760
    %1381 = vmatpush.msra.mxu0 %v1380
    %v1382 = vand.u32 %v717, 4294901760
    %1383 = vmatpush.msra.mxu0 %v1382
    %v1384 = vand.u32 %v716, 4294901760
    %1385 = vmatpush.msra.mxu0 %v1384
    %v1386 = vand.u32 %v715, 4294901760
    %1387 = vmatpush.msra.mxu0 %v1386
    %v1388 = vand.u32 %v714, 4294901760
    %1389 = vmatpush.msra.mxu0 %v1388
    %v1390 = vand.u32 %v713, 4294901760
    %1391 = vmatpush.msra.mxu0 %v1390
    %v1392 = vand.u32 %v712, 4294901760
    %1393 = vmatpush.msra.mxu0 %v1392
    %v1394 = vand.u32 %v711, 4294901760
    %1395 = vmatpush.msra.mxu0 %v1394
    %v1396 = vand.u32 %v710, 4294901760
    %1397 = vmatpush.msra.mxu0 %v1396
    %v1398 = vand.u32 %v709, 4294901760
    %1399 = vmatpush.msra.mxu0 %v1398
    %v1400 = vand.u32 %v708, 4294901760
    %1401 = vmatpush.msra.mxu0 %v1400
    %v1402 = vand.u32 %v707, 4294901760
    %1403 = vmatpush.msra.mxu0 %v1402
    %v1404 = vand.u32 %v690, 4294901760
    %1405 = vmatmul.f32.gmra.mxu0 %v1404
    %v1406 = vpop.f32.mrf.mxu0
    %v1407 = vadd.f32 %v1370, %v1406
    %1408 = vdwg.mxu0
    %1409 = vst [vmem:[%s8] sm:$0xff] %v1407
    // Predicated region
    $region58: #{two_tower_forward.1} parent=1 // pred_check
      _
    $region59: #{two_tower_forward.1} parent=1 // pred_check_branch
      %1411 = sbr.rel (0) target = $region61
    $region60: #{two_tower_forward.1} parent=1 // pred_region
      _
    $region61: #{two_tower_forward.1} parent=1 // pred_fallthru
      _
    // Predicated region
    $region62: #{two_tower_forward.1} parent=1 // pred_check
      _
    $region63: #{two_tower_forward.1} parent=1 // pred_check_branch
      %1413 = sbr.rel (0) target = $region65
    $region64: #{two_tower_forward.1} parent=1 // pred_region
      _
    $region65: #{two_tower_forward.1} parent=1 // pred_fallthru
      _
    %1414 = vsyncpa [#allocation3], 1
    %1415 = vsyncpa [#allocation5], 1
    %1416 = vsyncpa [#allocation8], 1
    %1417 = vsyncpa [#allocation11], 1

</llo_original>
